<compile_context>
chip_gen: v7x
topology: tpu7x:2x2x1
jax: 0.10.0
libtpu: 0.0.40
codegen_flags: <defaults>
</compile_context>

<pallas_src>
import functools

import jax
import jax.numpy as jnp
import numpy as np
from jax.experimental import pallas as pl
from jax.experimental.pallas import tpu as pltpu  # noqa: F401  (kept for TPU-specific tuning hooks)

# ---------------- problem sizes ----------------
NUM_NODE = 16        # nodes in the graph
HIDDEN = 32          # hidden_channels == output_channels (residual requires equality)
NUM_SUBG = 4         # number of subgraphs
NUM_CLASSES = 8      # pred output size
NUM_LAYERS = 2       # GLASSConv layers in EmbZGConv
SUBG_SIZE = 6        # nodes per subgraph (full node2subg)
SUBSET_SIZE = 4      # OneHeadPGLASS.subsetsize (sampled subset used inside conv)
MAX_DEG = 8          # embedding table size is MAX_DEG + 1
Z_RATIO = 0.8
LN_EPS = 1e-5
LANES = 128          # lane-dense width of the packed operand buffer and the output


# ---------------- packed-buffer layout ----------------
# Every tensor is zero-padded to LANES lanes and stacked row-wise.  All row counts are
# multiples of 8, so every slab starts on a sublane boundary and every static slice is
# a clean tile-aligned view (no rotates).
def make_layout(M, H, L):
    lo = {}
    r = 0

    def take(name, rows):
        nonlocal r
        lo[name] = r
        r += rows

    take("x", M)        # (M, H)      batched node embeddings
    take("adj0", M)     # (M, M)      block-diag mean-adj, columns pre-scaled by w0 (z-mix folded)
    take("adj1", M)     # (M, M)      block-diag mean-adj, columns pre-scaled by w1
    take("w1", M)       # (M, H)      per-node comb-mix weight (z on subset members, 1-z else)
    take("pool", 8)     # (S, M)      mean-pool matrix, row-padded to 8
    take("Wp", H)       # (H, LANES)  prediction head weight (class dim zero-padded)
    take("bp", 8)       # (1, LANES)  prediction head bias, row-padded to 8
    layers = []
    for _ in range(L):
        d = {}
        for name, rows in (("Wt0", H), ("Wt1", H), ("Wca0", H), ("Wca1", H),
                           ("Wcb0", H), ("Wcb1", H), ("bt", 8), ("bcm", M)):
            d[name] = r
            r += rows
        layers.append(d)
    lo["layers"] = tuple(layers)
    lo["total"] = r
    return lo


# ---------------- Pallas kernel (all subgraphs, one invocation, one packed operand) ----------------
def glass_kernel(p_ref, out_ref, *, layout, num_layers, hidden, m_rows):
    H, M = hidden, m_rows
    lo = layout

    x = p_ref[lo["x"]:lo["x"] + M, :H]               # (M, H)
    adj0 = p_ref[lo["adj0"]:lo["adj0"] + M, :M]      # (M, M)
    adj1 = p_ref[lo["adj1"]:lo["adj1"] + M, :M]      # (M, M)
    w1 = p_ref[lo["w1"]:lo["w1"] + M, :H]            # (M, H)
    w0 = 1.0 - w1                                    # hoisted out of the layer loop

    for l in range(num_layers):
        ly = lo["layers"][l]
        Wt0 = p_ref[ly["Wt0"]:ly["Wt0"] + H, :H]
        Wt1 = p_ref[ly["Wt1"]:ly["Wt1"] + H, :H]
        Wca0 = p_ref[ly["Wca0"]:ly["Wca0"] + H, :H]   # LayerNorm gain folded in on host
        Wca1 = p_ref[ly["Wca1"]:ly["Wca1"] + H, :H]
        Wcb0 = p_ref[ly["Wcb0"]:ly["Wcb0"] + H, :H]
        Wcb1 = p_ref[ly["Wcb1"]:ly["Wcb1"] + H, :H]
        bt0 = p_ref[ly["bt"]:ly["bt"] + 1, :H]
        bt1 = p_ref[ly["bt"] + 1:ly["bt"] + 2, :H]
        bcm = p_ref[ly["bcm"]:ly["bcm"] + M, :H]      # pre-mixed comb bias (LN bias folded in)

        x_in = x
        # --- trans_fns (two separate H->H matmuls: no lane-offset slices) + activation ---
        h0 = jax.nn.relu(jnp.dot(x_in, Wt0, preferred_element_type=jnp.float32) + bt0)
        h1 = jax.nn.relu(jnp.dot(x_in, Wt1, preferred_element_type=jnp.float32) + bt1)
        # --- mean-aggregation spmm with the z-ratio mix folded into the adjacency ---
        xa = (jnp.dot(adj0, h0, preferred_element_type=jnp.float32)
              + jnp.dot(adj1, h1, preferred_element_type=jnp.float32))
        # --- LayerNorm (independent reductions; affine folded into comb weights) ---
        mu = jnp.mean(xa, axis=-1, keepdims=True)
        ms = jnp.mean(xa * xa, axis=-1, keepdims=True)
        xn = (xa - mu) * jax.lax.rsqrt(ms - mu * mu + LN_EPS)
        # (dropout is identity in eval mode)
        # --- comb_fns: concat replaced by split weights; bias + residual folded into one add ---
        c0 = (jnp.dot(xn, Wca0, preferred_element_type=jnp.float32)
              + jnp.dot(x_in, Wcb0, preferred_element_type=jnp.float32))
        c1 = (jnp.dot(xn, Wca1, preferred_element_type=jnp.float32)
              + jnp.dot(x_in, Wcb1, preferred_element_type=jnp.float32))
        x = w0 * c0 + w1 * c1 + bcm + x_in

    # --- prediction head, reordered for lane-dense tiles: (x @ Wp) first, then pool ---
    Wp = p_ref[lo["Wp"]:lo["Wp"] + H, :]              # (H, 128)
    bp = p_ref[lo["bp"]:lo["bp"] + 1, :]              # (1, 128)
    pool = p_ref[lo["pool"]:lo["pool"] + 8, :M]       # (8, M)
    t = jnp.dot(x, Wp, preferred_element_type=jnp.float32)               # (M, 128) lane-dense
    out_ref[...] = jnp.dot(pool, t, preferred_element_type=jnp.float32) + bp  # (8, 128) unmasked


def _pad_lanes(a, lanes=LANES):
    a = jnp.asarray(a, jnp.float32)
    return jnp.pad(a, ((0, 0), (0, lanes - a.shape[1])))


def one_head_pglass_forward(x_base, adj_mean, mask_sub, mask_pool, params):
    """x_base: [N, H]; adj_mean: [N, N]; masks: [S, N, 1]; returns [S, C]."""
    N, H = x_base.shape
    S = mask_sub.shape[0]
    C = params["Wp"].shape[-1]
    L = params["Wt"].shape[0]
    M = S * N
    z = Z_RATIO
    lo = make_layout(M, H, L)

    # ---------------- host-side packing (one-time / offline in a real deployment) ----------------
    x_batched = jnp.tile(x_base, (S, 1))                                     # (M, H)
    adj_block = jnp.kron(jnp.eye(S, dtype=adj_mean.dtype), adj_mean)         # (M, M)

    m_sub = mask_sub.reshape(M)
    w1_vec = jnp.where(m_sub > 0.5, z, 1.0 - z).astype(jnp.float32)          # (M,)
    w0_vec = 1.0 - w1_vec
    adj0 = adj_block * w0_vec[None, :]       # fold the trans-branch z-mix into the aggregation
    adj1 = adj_block * w1_vec[None, :]
    w1_mat = jnp.broadcast_to(w1_vec[:, None], (M, H))

    mp = mask_pool.reshape(S, N)
    cnt = jnp.maximum(mp.sum(axis=1, keepdims=True), 1.0)                    # (S, 1)
    pool_mat = (jnp.eye(S, dtype=jnp.float32)[:, :, None]
                * (mp / cnt)[None, :, :]).reshape(S, M)                      # (S, M)
    pool_pad = jnp.pad(pool_mat, ((0, 8 - S), (0, 0)))                       # (8, M)

    bp_pad = jnp.pad(jnp.asarray(params["bp"], jnp.float32), ((0, 7), (0, 0)))  # (8, C)

    pieces = [x_batched, adj0, adj1, w1_mat, pool_pad, params["Wp"], bp_pad]

    for l in range(L):
        g = params["ln_g"][l].reshape(H)
        b = params["ln_b"][l].reshape(1, H)
        Wca0 = g[:, None] * params["Wc"][l, 0, :H]         # LN gain folded into comb weight
        Wca1 = g[:, None] * params["Wc"][l, 1, :H]
        Wcb0 = params["Wc"][l, 0, H:]
        Wcb1 = params["Wc"][l, 1, H:]
        bc0 = params["bc"][l, 0] + b @ params["Wc"][l, 0, :H]   # LN bias folded into comb bias
        bc1 = params["bc"][l, 1] + b @ params["Wc"][l, 1, :H]
        bc_mix = w0_vec[:, None] * bc0 + w1_vec[:, None] * bc1  # (M, H) pre-mixed comb bias
        bt_blk = (jnp.zeros((8, H), jnp.float32)
                  .at[0].set(params["bt"][l, 0, 0])
                  .at[1].set(params["bt"][l, 1, 0]))
        pieces += [params["Wt"][l, 0], params["Wt"][l, 1],
                   Wca0, Wca1, Wcb0, Wcb1, bt_blk, bc_mix]

    packed = jnp.concatenate([_pad_lanes(p) for p in pieces], axis=0)        # (R, 128)
    assert packed.shape == (lo["total"], LANES)

    kernel = functools.partial(glass_kernel, layout=lo, num_layers=L, hidden=H, m_rows=M)
    out = pl.pallas_call(
        kernel,
        out_shape=jax.ShapeDtypeStruct((8, LANES), jnp.float32),
        # grid-less: the single packed operand (~0.5 MB) and all temporaries are VMEM-resident,
        # one HBM->VMEM DMA for all operands, no per-grid-step overhead.
    )(packed)
    return out[:S, :C]


# ---------------- pure-JAX reference (same math, unfused, batched) ----------------
def reference_forward(x_base, adj_mean, mask_sub, mask_pool, params):
    S = mask_sub.shape[0]
    L = params["Wt"].shape[0]
    z = Z_RATIO
    x = jnp.broadcast_to(x_base[None], (S,) + x_base.shape)
    for l in range(L):
        x_in = x
        h0 = jax.nn.relu(jnp.einsum("snh,hk->snk", x_in, params["Wt"][l, 0]) + params["bt"][l, 0])
        h1 = jax.nn.relu(jnp.einsum("snh,hk->snk", x_in, params["Wt"][l, 1]) + params["bt"][l, 1])
        xm = jnp.where(mask_sub > 0.5, z * h1 + (1 - z) * h0, z * h0 + (1 - z) * h1)
        xa = jnp.einsum("mn,snh->smh", adj_mean, xm)
        mu = xa.mean(-1, keepdims=True)
        var = ((xa - mu) ** 2).mean(-1, keepdims=True)
        xn = (xa - mu) * jax.lax.rsqrt(var + LN_EPS) * params["ln_g"][l] + params["ln_b"][l]
        xc = jnp.concatenate([xn, x_in], axis=-1)
        c0 = jnp.einsum("snh,hk->snk", xc, params["Wc"][l, 0]) + params["bc"][l, 0]
        c1 = jnp.einsum("snh,hk->snk", xc, params["Wc"][l, 1]) + params["bc"][l, 1]
        y = jnp.where(mask_sub > 0.5, z * c1 + (1 - z) * c0, z * c0 + (1 - z) * c1)
        x = y + x_in
    cnt = jnp.maximum(mask_pool.sum(axis=(1, 2)), 1.0)            # (S,)
    pooled = (x * mask_pool).sum(axis=1) / cnt[:, None]           # (S, H)
    return pooled @ params["Wp"] + params["bp"]                   # (S, C)


# ---------------- deterministic parameter / input construction ----------------
def build_everything():
    key = jax.random.PRNGKey(0)
    ks = jax.random.split(key, 16)

    # node "degree" features and embedding table (EmbZGConv.input_emb)
    x_deg = jax.random.randint(ks[0], (NUM_NODE,), 0, MAX_DEG + 1)
    emb_table = 0.1 * jax.random.normal(ks[1], (MAX_DEG + 1, HIDDEN), jnp.float32)
    post_g = jnp.ones((HIDDEN,), jnp.float32)
    post_b = jnp.zeros((HIDDEN,), jnp.float32)

    # embedding lookup + post_emb LayerNorm (glue; dropout is identity in eval)
    x_emb = emb_table[x_deg]                                  # (N, H)
    mu = x_emb.mean(-1, keepdims=True)
    var = ((x_emb - mu) ** 2).mean(-1, keepdims=True)
    x_base = (x_emb - mu) * jax.lax.rsqrt(var + LN_EPS) * post_g + post_b

    # deterministic ring graph (bidirectional) with edge weights
    src = jnp.arange(NUM_NODE)
    dst = (src + 1) % NUM_NODE
    rows = jnp.concatenate([src, dst])
    cols = jnp.concatenate([dst, src])
    edge_index = jnp.stack([rows, cols])                      # (2, 2N)
    edge_weight = 0.5 + 0.5 * jnp.cos(jnp.arange(2 * NUM_NODE, dtype=jnp.float32)) ** 2
    A = jnp.zeros((NUM_NODE, NUM_NODE), jnp.float32).at[rows, cols].set(edge_weight)
    deg = (A != 0).sum(axis=1).astype(jnp.float32)
    adj_mean = A / jnp.maximum(deg, 1.0)[:, None]             # spmm_mean as dense matmul

    # node2subg (full membership) and deterministic subset (first SUBSET_SIZE members)
    node2subg = np.zeros((NUM_SUBG, NUM_NODE), np.float32)
    node2subg_subset = np.zeros((NUM_SUBG, NUM_NODE), np.float32)
    for s in range(NUM_SUBG):
        members = [(s * 4 + j) % NUM_NODE for j in range(SUBG_SIZE)]
        node2subg[s, members] = 1.0
        node2subg_subset[s, members[:SUBSET_SIZE]] = 1.0
    mask_pool = jnp.asarray(node2subg)[:, :, None]            # (S, N, 1)
    mask_sub = jnp.asarray(node2subg_subset)[:, :, None]      # (S, N, 1)

    # GLASSConv parameters, stacked over layers (in == out == HIDDEN for residual)
    def lin(k, fan_in, fan_out):
        return 0.1 * jax.random.normal(k, (fan_in, fan_out), jnp.float32)

    kt = jax.random.split(ks[2], NUM_LAYERS * 2)
    kc = jax.random.split(ks[3], NUM_LAYERS * 2)
    Wt = jnp.stack([jnp.stack([lin(kt[2 * l + f], HIDDEN, HIDDEN) for f in range(2)]) for l in range(NUM_LAYERS)])
    Wc = jnp.stack([jnp.stack([lin(kc[2 * l + f], 2 * HIDDEN, HIDDEN) for f in range(2)]) for l in range(NUM_LAYERS)])
    bt = 0.01 * jax.random.normal(ks[4], (NUM_LAYERS, 2, 1, HIDDEN), jnp.float32)
    bc = 0.01 * jax.random.normal(ks[5], (NUM_LAYERS, 2, 1, HIDDEN), jnp.float32)
    ln_g = jnp.ones((NUM_LAYERS, 1, HIDDEN), jnp.float32)
    ln_b = jnp.zeros((NUM_LAYERS, 1, HIDDEN), jnp.float32)

    # pred head: Linear(HIDDEN -> NUM_CLASSES)
    Wp = 0.1 * jax.random.normal(ks[6], (HIDDEN, NUM_CLASSES), jnp.float32)
    bp = 0.01 * jax.random.normal(ks[7], (1, NUM_CLASSES), jnp.float32)

    params = dict(Wt=Wt, bt=bt, Wc=Wc, bc=bc, ln_g=ln_g, ln_b=ln_b, Wp=Wp, bp=bp)
    inputs = dict(x_deg=x_deg, edge_index=edge_index, edge_weight=edge_weight,
                  node2subg=jnp.asarray(node2subg))
    return x_base, adj_mean, mask_sub, mask_pool, params, inputs


if __name__ == "__main__":
    x_base, adj_mean, mask_sub, mask_pool, params, _inputs = build_everything()

    out = one_head_pglass_forward(x_base, adj_mean, mask_sub, mask_pool, params)
    out = jax.block_until_ready(out)

    ref = jax.block_until_ready(reference_forward(x_base, adj_mean, mask_sub, mask_pool, params))
    np.testing.assert_allclose(np.asarray(out), np.asarray(ref), rtol=1e-4, atol=1e-4)

    assert out.shape == (NUM_SUBG, NUM_CLASSES)
    print("KERNEL_OK")
</pallas_src>

<mosaic_0001>
module attributes {stable_mosaic.version = 11 : i64} {
  func.func @glass_kernel(%arg0: memref<832x128xf32, #tpu.memory_space<vmem>>, %arg1: memref<8x128xf32, #tpu.memory_space<vmem>>) attributes {dimension_semantics = [], scalar_prefetch = 0 : i64, scratch_operands = 0 : i64, tpu.core_type = #tpu.core_type<tc>} {
    %c0 = arith.constant 0 : index
    %c0_0 = arith.constant 0 : index
    %0 = vector.load %arg0[%c0, %c0_0] : memref<832x128xf32, #tpu.memory_space<vmem>>, vector<64x32xf32>
    %c64 = arith.constant 64 : index
    %c0_1 = arith.constant 0 : index
    %1 = vector.load %arg0[%c64, %c0_1] : memref<832x128xf32, #tpu.memory_space<vmem>>, vector<64x64xf32>
    %c128 = arith.constant 128 : index
    %c0_2 = arith.constant 0 : index
    %2 = vector.load %arg0[%c128, %c0_2] : memref<832x128xf32, #tpu.memory_space<vmem>>, vector<64x64xf32>
    %c192 = arith.constant 192 : index
    %c0_3 = arith.constant 0 : index
    %3 = vector.load %arg0[%c192, %c0_3] : memref<832x128xf32, #tpu.memory_space<vmem>>, vector<64x32xf32>
    %cst = arith.constant 1.000000e+00 : f32
    %4 = vector.broadcast %cst : f32 to vector<64x32xf32>
    %5 = arith.subf %4, %3 : vector<64x32xf32>
    %c304 = arith.constant 304 : index
    %c0_4 = arith.constant 0 : index
    %6 = vector.load %arg0[%c304, %c0_4] : memref<832x128xf32, #tpu.memory_space<vmem>>, vector<32x32xf32>
    %c336 = arith.constant 336 : index
    %c0_5 = arith.constant 0 : index
    %7 = vector.load %arg0[%c336, %c0_5] : memref<832x128xf32, #tpu.memory_space<vmem>>, vector<32x32xf32>
    %c368 = arith.constant 368 : index
    %c0_6 = arith.constant 0 : index
    %8 = vector.load %arg0[%c368, %c0_6] : memref<832x128xf32, #tpu.memory_space<vmem>>, vector<32x32xf32>
    %c400 = arith.constant 400 : index
    %c0_7 = arith.constant 0 : index
    %9 = vector.load %arg0[%c400, %c0_7] : memref<832x128xf32, #tpu.memory_space<vmem>>, vector<32x32xf32>
    %c432 = arith.constant 432 : index
    %c0_8 = arith.constant 0 : index
    %10 = vector.load %arg0[%c432, %c0_8] : memref<832x128xf32, #tpu.memory_space<vmem>>, vector<32x32xf32>
    %c464 = arith.constant 464 : index
    %c0_9 = arith.constant 0 : index
    %11 = vector.load %arg0[%c464, %c0_9] : memref<832x128xf32, #tpu.memory_space<vmem>>, vector<32x32xf32>
    %c496 = arith.constant 496 : index
    %c0_10 = arith.constant 0 : index
    %12 = vector.load %arg0[%c496, %c0_10] : memref<832x128xf32, #tpu.memory_space<vmem>>, vector<1x32xf32>
    %c497 = arith.constant 497 : index
    %c0_11 = arith.constant 0 : index
    %13 = vector.load %arg0[%c497, %c0_11] : memref<832x128xf32, #tpu.memory_space<vmem>>, vector<1x32xf32>
    %c504 = arith.constant 504 : index
    %c0_12 = arith.constant 0 : index
    %14 = vector.load %arg0[%c504, %c0_12] : memref<832x128xf32, #tpu.memory_space<vmem>>, vector<64x32xf32>
    %cst_13 = arith.constant dense<0.000000e+00> : vector<64x32xf32>
    %15 = tpu.matmul %0, %6, %cst_13 {dimension_numbers = #tpu.dot_dimension_numbers<[1], [0], [0], [1], [0, 0, 1, 1], [], []>} : vector<64x32xf32>, vector<32x32xf32>, vector<64x32xf32> -> vector<64x32xf32>
    %16 = vector.broadcast %12 : vector<1x32xf32> to vector<64x32xf32>
    %17 = arith.addf %15, %16 : vector<64x32xf32>
    %cst_14 = arith.constant 0.000000e+00 : f32
    %18 = vector.broadcast %cst_14 : f32 to vector<64x32xf32>
    %19 = arith.maximumf %17, %18 : vector<64x32xf32>
    %cst_15 = arith.constant dense<0.000000e+00> : vector<64x32xf32>
    %20 = tpu.matmul %0, %7, %cst_15 {dimension_numbers = #tpu.dot_dimension_numbers<[1], [0], [0], [1], [0, 0, 1, 1], [], []>} : vector<64x32xf32>, vector<32x32xf32>, vector<64x32xf32> -> vector<64x32xf32>
    %21 = vector.broadcast %13 : vector<1x32xf32> to vector<64x32xf32>
    %22 = arith.addf %20, %21 : vector<64x32xf32>
    %cst_16 = arith.constant 0.000000e+00 : f32
    %23 = vector.broadcast %cst_16 : f32 to vector<64x32xf32>
    %24 = arith.maximumf %22, %23 : vector<64x32xf32>
    %cst_17 = arith.constant dense<0.000000e+00> : vector<64x32xf32>
    %25 = tpu.matmul %1, %19, %cst_17 {dimension_numbers = #tpu.dot_dimension_numbers<[1], [0], [0], [1], [0, 0, 1, 1], [], []>} : vector<64x64xf32>, vector<64x32xf32>, vector<64x32xf32> -> vector<64x32xf32>
    %cst_18 = arith.constant dense<0.000000e+00> : vector<64x32xf32>
    %26 = tpu.matmul %2, %24, %cst_18 {dimension_numbers = #tpu.dot_dimension_numbers<[1], [0], [0], [1], [0, 0, 1, 1], [], []>} : vector<64x64xf32>, vector<64x32xf32>, vector<64x32xf32> -> vector<64x32xf32>
    %27 = arith.addf %25, %26 : vector<64x32xf32>
    %cst_19 = arith.constant dense<0.000000e+00> : vector<64xf32>
    %28 = vector.multi_reduction <add>, %27, %cst_19 [1] : vector<64x32xf32> to vector<64xf32>
    %29 = vector.shape_cast %28 : vector<64xf32> to vector<64x1xf32>
    %cst_20 = arith.constant 3.200000e+01 : f32
    %30 = vector.broadcast %cst_20 : f32 to vector<64x1xf32>
    %31 = arith.divf %29, %30 : vector<64x1xf32>
    %32 = arith.mulf %27, %27 : vector<64x32xf32>
    %cst_21 = arith.constant dense<0.000000e+00> : vector<64xf32>
    %33 = vector.multi_reduction <add>, %32, %cst_21 [1] : vector<64x32xf32> to vector<64xf32>
    %34 = vector.shape_cast %33 : vector<64xf32> to vector<64x1xf32>
    %cst_22 = arith.constant 3.200000e+01 : f32
    %35 = vector.broadcast %cst_22 : f32 to vector<64x1xf32>
    %36 = arith.divf %34, %35 : vector<64x1xf32>
    %37 = vector.broadcast %31 : vector<64x1xf32> to vector<64x32xf32>
    %38 = arith.subf %27, %37 : vector<64x32xf32>
    %39 = arith.mulf %31, %31 : vector<64x1xf32>
    %40 = arith.subf %36, %39 : vector<64x1xf32>
    %cst_23 = arith.constant 9.99999974E-6 : f32
    %41 = vector.broadcast %cst_23 : f32 to vector<64x1xf32>
    %42 = arith.addf %40, %41 : vector<64x1xf32>
    %43 = math.rsqrt %42 : vector<64x1xf32>
    %44 = vector.broadcast %43 : vector<64x1xf32> to vector<64x32xf32>
    %45 = arith.mulf %38, %44 : vector<64x32xf32>
    %cst_24 = arith.constant dense<0.000000e+00> : vector<64x32xf32>
    %46 = tpu.matmul %45, %8, %cst_24 {dimension_numbers = #tpu.dot_dimension_numbers<[1], [0], [0], [1], [0, 0, 1, 1], [], []>} : vector<64x32xf32>, vector<32x32xf32>, vector<64x32xf32> -> vector<64x32xf32>
    %cst_25 = arith.constant dense<0.000000e+00> : vector<64x32xf32>
    %47 = tpu.matmul %0, %10, %cst_25 {dimension_numbers = #tpu.dot_dimension_numbers<[1], [0], [0], [1], [0, 0, 1, 1], [], []>} : vector<64x32xf32>, vector<32x32xf32>, vector<64x32xf32> -> vector<64x32xf32>
    %48 = arith.addf %46, %47 : vector<64x32xf32>
    %cst_26 = arith.constant dense<0.000000e+00> : vector<64x32xf32>
    %49 = tpu.matmul %45, %9, %cst_26 {dimension_numbers = #tpu.dot_dimension_numbers<[1], [0], [0], [1], [0, 0, 1, 1], [], []>} : vector<64x32xf32>, vector<32x32xf32>, vector<64x32xf32> -> vector<64x32xf32>
    %cst_27 = arith.constant dense<0.000000e+00> : vector<64x32xf32>
    %50 = tpu.matmul %0, %11, %cst_27 {dimension_numbers = #tpu.dot_dimension_numbers<[1], [0], [0], [1], [0, 0, 1, 1], [], []>} : vector<64x32xf32>, vector<32x32xf32>, vector<64x32xf32> -> vector<64x32xf32>
    %51 = arith.addf %49, %50 : vector<64x32xf32>
    %52 = arith.mulf %5, %48 : vector<64x32xf32>
    %53 = arith.mulf %3, %51 : vector<64x32xf32>
    %54 = arith.addf %52, %53 : vector<64x32xf32>
    %55 = arith.addf %54, %14 : vector<64x32xf32>
    %56 = arith.addf %55, %0 : vector<64x32xf32>
    %c568 = arith.constant 568 : index
    %c0_28 = arith.constant 0 : index
    %57 = vector.load %arg0[%c568, %c0_28] : memref<832x128xf32, #tpu.memory_space<vmem>>, vector<32x32xf32>
    %c600 = arith.constant 600 : index
    %c0_29 = arith.constant 0 : index
    %58 = vector.load %arg0[%c600, %c0_29] : memref<832x128xf32, #tpu.memory_space<vmem>>, vector<32x32xf32>
    %c632 = arith.constant 632 : index
    %c0_30 = arith.constant 0 : index
    %59 = vector.load %arg0[%c632, %c0_30] : memref<832x128xf32, #tpu.memory_space<vmem>>, vector<32x32xf32>
    %c664 = arith.constant 664 : index
    %c0_31 = arith.constant 0 : index
    %60 = vector.load %arg0[%c664, %c0_31] : memref<832x128xf32, #tpu.memory_space<vmem>>, vector<32x32xf32>
    %c696 = arith.constant 696 : index
    %c0_32 = arith.constant 0 : index
    %61 = vector.load %arg0[%c696, %c0_32] : memref<832x128xf32, #tpu.memory_space<vmem>>, vector<32x32xf32>
    %c728 = arith.constant 728 : index
    %c0_33 = arith.constant 0 : index
    %62 = vector.load %arg0[%c728, %c0_33] : memref<832x128xf32, #tpu.memory_space<vmem>>, vector<32x32xf32>
    %c760 = arith.constant 760 : index
    %c0_34 = arith.constant 0 : index
    %63 = vector.load %arg0[%c760, %c0_34] : memref<832x128xf32, #tpu.memory_space<vmem>>, vector<1x32xf32>
    %c761 = arith.constant 761 : index
    %c0_35 = arith.constant 0 : index
    %64 = vector.load %arg0[%c761, %c0_35] : memref<832x128xf32, #tpu.memory_space<vmem>>, vector<1x32xf32>
    %c768 = arith.constant 768 : index
    %c0_36 = arith.constant 0 : index
    %65 = vector.load %arg0[%c768, %c0_36] : memref<832x128xf32, #tpu.memory_space<vmem>>, vector<64x32xf32>
    %cst_37 = arith.constant dense<0.000000e+00> : vector<64x32xf32>
    %66 = tpu.matmul %56, %57, %cst_37 {dimension_numbers = #tpu.dot_dimension_numbers<[1], [0], [0], [1], [0, 0, 1, 1], [], []>} : vector<64x32xf32>, vector<32x32xf32>, vector<64x32xf32> -> vector<64x32xf32>
    %67 = vector.broadcast %63 : vector<1x32xf32> to vector<64x32xf32>
    %68 = arith.addf %66, %67 : vector<64x32xf32>
    %cst_38 = arith.constant 0.000000e+00 : f32
    %69 = vector.broadcast %cst_38 : f32 to vector<64x32xf32>
    %70 = arith.maximumf %68, %69 : vector<64x32xf32>
    %cst_39 = arith.constant dense<0.000000e+00> : vector<64x32xf32>
    %71 = tpu.matmul %56, %58, %cst_39 {dimension_numbers = #tpu.dot_dimension_numbers<[1], [0], [0], [1], [0, 0, 1, 1], [], []>} : vector<64x32xf32>, vector<32x32xf32>, vector<64x32xf32> -> vector<64x32xf32>
    %72 = vector.broadcast %64 : vector<1x32xf32> to vector<64x32xf32>
    %73 = arith.addf %71, %72 : vector<64x32xf32>
    %cst_40 = arith.constant 0.000000e+00 : f32
    %74 = vector.broadcast %cst_40 : f32 to vector<64x32xf32>
    %75 = arith.maximumf %73, %74 : vector<64x32xf32>
    %cst_41 = arith.constant dense<0.000000e+00> : vector<64x32xf32>
    %76 = tpu.matmul %1, %70, %cst_41 {dimension_numbers = #tpu.dot_dimension_numbers<[1], [0], [0], [1], [0, 0, 1, 1], [], []>} : vector<64x64xf32>, vector<64x32xf32>, vector<64x32xf32> -> vector<64x32xf32>
    %cst_42 = arith.constant dense<0.000000e+00> : vector<64x32xf32>
    %77 = tpu.matmul %2, %75, %cst_42 {dimension_numbers = #tpu.dot_dimension_numbers<[1], [0], [0], [1], [0, 0, 1, 1], [], []>} : vector<64x64xf32>, vector<64x32xf32>, vector<64x32xf32> -> vector<64x32xf32>
    %78 = arith.addf %76, %77 : vector<64x32xf32>
    %cst_43 = arith.constant dense<0.000000e+00> : vector<64xf32>
    %79 = vector.multi_reduction <add>, %78, %cst_43 [1] : vector<64x32xf32> to vector<64xf32>
    %80 = vector.shape_cast %79 : vector<64xf32> to vector<64x1xf32>
    %cst_44 = arith.constant 3.200000e+01 : f32
    %81 = vector.broadcast %cst_44 : f32 to vector<64x1xf32>
    %82 = arith.divf %80, %81 : vector<64x1xf32>
    %83 = arith.mulf %78, %78 : vector<64x32xf32>
    %cst_45 = arith.constant dense<0.000000e+00> : vector<64xf32>
    %84 = vector.multi_reduction <add>, %83, %cst_45 [1] : vector<64x32xf32> to vector<64xf32>
    %85 = vector.shape_cast %84 : vector<64xf32> to vector<64x1xf32>
    %cst_46 = arith.constant 3.200000e+01 : f32
    %86 = vector.broadcast %cst_46 : f32 to vector<64x1xf32>
    %87 = arith.divf %85, %86 : vector<64x1xf32>
    %88 = vector.broadcast %82 : vector<64x1xf32> to vector<64x32xf32>
    %89 = arith.subf %78, %88 : vector<64x32xf32>
    %90 = arith.mulf %82, %82 : vector<64x1xf32>
    %91 = arith.subf %87, %90 : vector<64x1xf32>
    %cst_47 = arith.constant 9.99999974E-6 : f32
    %92 = vector.broadcast %cst_47 : f32 to vector<64x1xf32>
    %93 = arith.addf %91, %92 : vector<64x1xf32>
    %94 = math.rsqrt %93 : vector<64x1xf32>
    %95 = vector.broadcast %94 : vector<64x1xf32> to vector<64x32xf32>
    %96 = arith.mulf %89, %95 : vector<64x32xf32>
    %cst_48 = arith.constant dense<0.000000e+00> : vector<64x32xf32>
    %97 = tpu.matmul %96, %59, %cst_48 {dimension_numbers = #tpu.dot_dimension_numbers<[1], [0], [0], [1], [0, 0, 1, 1], [], []>} : vector<64x32xf32>, vector<32x32xf32>, vector<64x32xf32> -> vector<64x32xf32>
    %cst_49 = arith.constant dense<0.000000e+00> : vector<64x32xf32>
    %98 = tpu.matmul %56, %61, %cst_49 {dimension_numbers = #tpu.dot_dimension_numbers<[1], [0], [0], [1], [0, 0, 1, 1], [], []>} : vector<64x32xf32>, vector<32x32xf32>, vector<64x32xf32> -> vector<64x32xf32>
    %99 = arith.addf %97, %98 : vector<64x32xf32>
    %cst_50 = arith.constant dense<0.000000e+00> : vector<64x32xf32>
    %100 = tpu.matmul %96, %60, %cst_50 {dimension_numbers = #tpu.dot_dimension_numbers<[1], [0], [0], [1], [0, 0, 1, 1], [], []>} : vector<64x32xf32>, vector<32x32xf32>, vector<64x32xf32> -> vector<64x32xf32>
    %cst_51 = arith.constant dense<0.000000e+00> : vector<64x32xf32>
    %101 = tpu.matmul %56, %62, %cst_51 {dimension_numbers = #tpu.dot_dimension_numbers<[1], [0], [0], [1], [0, 0, 1, 1], [], []>} : vector<64x32xf32>, vector<32x32xf32>, vector<64x32xf32> -> vector<64x32xf32>
    %102 = arith.addf %100, %101 : vector<64x32xf32>
    %103 = arith.mulf %5, %99 : vector<64x32xf32>
    %104 = arith.mulf %3, %102 : vector<64x32xf32>
    %105 = arith.addf %103, %104 : vector<64x32xf32>
    %106 = arith.addf %105, %65 : vector<64x32xf32>
    %107 = arith.addf %106, %56 : vector<64x32xf32>
    %c264 = arith.constant 264 : index
    %c0_52 = arith.constant 0 : index
    %108 = vector.load %arg0[%c264, %c0_52] : memref<832x128xf32, #tpu.memory_space<vmem>>, vector<32x128xf32>
    %c296 = arith.constant 296 : index
    %c0_53 = arith.constant 0 : index
    %109 = vector.load %arg0[%c296, %c0_53] : memref<832x128xf32, #tpu.memory_space<vmem>>, vector<1x128xf32>
    %c256 = arith.constant 256 : index
    %c0_54 = arith.constant 0 : index
    %110 = vector.load %arg0[%c256, %c0_54] : memref<832x128xf32, #tpu.memory_space<vmem>>, vector<8x64xf32>
    %cst_55 = arith.constant dense<0.000000e+00> : vector<64x128xf32>
    %111 = tpu.matmul %107, %108, %cst_55 {dimension_numbers = #tpu.dot_dimension_numbers<[1], [0], [0], [1], [0, 0, 1, 1], [], []>} : vector<64x32xf32>, vector<32x128xf32>, vector<64x128xf32> -> vector<64x128xf32>
    %cst_56 = arith.constant dense<0.000000e+00> : vector<8x128xf32>
    %112 = tpu.matmul %110, %111, %cst_56 {dimension_numbers = #tpu.dot_dimension_numbers<[1], [0], [0], [1], [0, 0, 1, 1], [], []>} : vector<8x64xf32>, vector<64x128xf32>, vector<8x128xf32> -> vector<8x128xf32>
    %113 = vector.broadcast %109 : vector<1x128xf32> to vector<8x128xf32>
    %114 = arith.addf %112, %113 : vector<8x128xf32>
    %c0_57 = arith.constant 0 : index
    %c0_58 = arith.constant 0 : index
    %115 = vector.load %arg1[%c0_57, %c0_58] : memref<8x128xf32, #tpu.memory_space<vmem>>, vector<8x128xf32>
    tpu.vector_store %arg1[%c0_57, %c0_58], %114 {strides = array<i32>} : memref<8x128xf32, #tpu.memory_space<vmem>>, vector<8x128xf32>,
    return
  }
}

</mosaic_0001>

<llo_original>
// kernel: tpu_custom_call.1
$region0: #{tpu_custom_call.1}
  #allocation0 [shape = 'u32[]', space=smem, size = 0x4, offset = 0x4, fixed_abs, tag = 'smem constant byte address 0x4 - core index']
  #allocation1 [shape = 'u32[144,128]{1,0:T(1,128)}', space=vmem, size = 0x12000, scoped, tag = 'internal scratch']
  %s0 = inlined_call_operand.hbm [shape: f32[832,128], index: 0, kind: input, shape index: {}]
  %s1 = inlined_call_operand.hbm [shape: f32[8,128], index: 1, kind: output, shape index: {}]
  %s2 = sld [smem:[#allocation0]]
  $region18: #{tpu_custom_call.1} parent=0
    _
  %s4 = ssub.s32 1, %s2
  %s5 = scalar_select 0, %s4, %s2
  $region1: #{tpu_custom_call.1} parent=0
    #allocation2 [shape = 'u8[425984]{0}', space=vmem, size = 0x68000, scoped, tag = 'input window, operand 0, single buffered']
    #allocation3 [shape = 's32[1]{0}', space=sflag, size = 0x4, scoped, tag = 'scoped memory for tpu_custom_call.1']
    #allocation4 [shape = 's32[1]{0}', space=sflag, size = 0x4, scoped, tag = 'scoped memory for tpu_custom_call.1']
    #allocation5 [shape = 'u8[4096]{0}', space=vmem, size = 0x1000, scoped, tag = 'output window, operand 0, single buffered']
    %6 = vsyncpa [#allocation3], 0
    %7 = vsyncpa [#allocation4], 0
    // Predicated region
    $region2: #{tpu_custom_call.1} parent=1 // pred_check
      _
    $region3: #{tpu_custom_call.1} parent=1 // pred_check_branch
      %9 = sbr.rel (0) target = $region5
    $region4: #{tpu_custom_call.1} parent=1 // pred_region
      %s11 = ssub.s32 13312, 13312
      %12 = vsyncadd [#allocation3], %s11
      %s13 = sshll.u32 [#allocation2], 4
      %s14 = int_to_ptr.vmem [resolvable:$true] %s13
      %19 = dma.hbm_to_vmem [thread:$0]  %s0, 13312, %s14, [#allocation3], 128, 128, 8
    $region5: #{tpu_custom_call.1} parent=1 // pred_fallthru
      _
    // Predicated region
    $region6: #{tpu_custom_call.1} parent=1 // pred_check
      _
    $region7: #{tpu_custom_call.1} parent=1 // pred_check_branch
      %21 = sbr.rel (0) target = $region9
    $region8: #{tpu_custom_call.1} parent=1 // pred_region
      %22 = dma.done [#allocation3], 13312
    $region9: #{tpu_custom_call.1} parent=1 // pred_fallthru
      _
    %v23 = vld [vmem:[#allocation2] sm:$0xff]
    %v24 = vld [vmem:[#allocation2 + $0x8] sm:$0xff]
    %v25 = vld [vmem:[#allocation2 + $0x10] sm:$0xff]
    %v26 = vld [vmem:[#allocation2 + $0x18] sm:$0xff]
    %v27 = vld [vmem:[#allocation2 + $0x20] sm:$0xff]
    %v28 = vld [vmem:[#allocation2 + $0x28] sm:$0xff]
    %v29 = vld [vmem:[#allocation2 + $0x30] sm:$0xff]
    %v30 = vld [vmem:[#allocation2 + $0x38] sm:$0xff]
    %v31 = vld [vmem:[#allocation2 + $0x40] sm:$0xff]
    %v32 = vld [vmem:[#allocation2 + $0x48] sm:$0xff]
    %v33 = vld [vmem:[#allocation2 + $0x50] sm:$0xff]
    %v34 = vld [vmem:[#allocation2 + $0x58] sm:$0xff]
    %v35 = vld [vmem:[#allocation2 + $0x60] sm:$0xff]
    %v36 = vld [vmem:[#allocation2 + $0x68] sm:$0xff]
    %v37 = vld [vmem:[#allocation2 + $0x70] sm:$0xff]
    %v38 = vld [vmem:[#allocation2 + $0x78] sm:$0xff]
    %v39 = vld [vmem:[#allocation2 + $0x80] sm:$0xff]
    %v40 = vld [vmem:[#allocation2 + $0x88] sm:$0xff]
    %v41 = vld [vmem:[#allocation2 + $0x90] sm:$0xff]
    %v42 = vld [vmem:[#allocation2 + $0x98] sm:$0xff]
    %v43 = vld [vmem:[#allocation2 + $0xa0] sm:$0xff]
    %v44 = vld [vmem:[#allocation2 + $0xa8] sm:$0xff]
    %v45 = vld [vmem:[#allocation2 + $0xb0] sm:$0xff]
    %v46 = vld [vmem:[#allocation2 + $0xb8] sm:$0xff]
    %v47 = vld [vmem:[#allocation2 + $0xc0] sm:$0xff]
    %v48 = vld [vmem:[#allocation2 + $0xc8] sm:$0xff]
    %v49 = vld [vmem:[#allocation2 + $0xd0] sm:$0xff]
    %v50 = vld [vmem:[#allocation2 + $0xd8] sm:$0xff]
    %v51 = vld [vmem:[#allocation2 + $0xe0] sm:$0xff]
    %v52 = vld [vmem:[#allocation2 + $0xe8] sm:$0xff]
    %v53 = vld [vmem:[#allocation2 + $0xf0] sm:$0xff]
    %v54 = vld [vmem:[#allocation2 + $0xf8] sm:$0xff]
    %v55 = vsub.f32 1.0, %v47
    %v56 = vsub.f32 1.0, %v48
    %v57 = vsub.f32 1.0, %v49
    %v58 = vsub.f32 1.0, %v50
    %v59 = vsub.f32 1.0, %v51
    %v60 = vsub.f32 1.0, %v52
    %v61 = vsub.f32 1.0, %v53
    %v62 = vsub.f32 1.0, %v54
    %v63 = vld [vmem:[#allocation2 + $0x130] sm:$0xff]
    %v64 = vld [vmem:[#allocation2 + $0x138] sm:$0xff]
    %v65 = vld [vmem:[#allocation2 + $0x140] sm:$0xff]
    %v66 = vld [vmem:[#allocation2 + $0x148] sm:$0xff]
    %v67 = vld [vmem:[#allocation2 + $0x150] sm:$0xff]
    %v68 = vld [vmem:[#allocation2 + $0x158] sm:$0xff]
    %v69 = vld [vmem:[#allocation2 + $0x160] sm:$0xff]
    %v70 = vld [vmem:[#allocation2 + $0x168] sm:$0xff]
    %v71 = vld [vmem:[#allocation2 + $0x170] sm:$0xff]
    %v72 = vld [vmem:[#allocation2 + $0x178] sm:$0xff]
    %v73 = vld [vmem:[#allocation2 + $0x180] sm:$0xff]
    %v74 = vld [vmem:[#allocation2 + $0x188] sm:$0xff]
    %v75 = vld [vmem:[#allocation2 + $0x190] sm:$0xff]
    %v76 = vld [vmem:[#allocation2 + $0x198] sm:$0xff]
    %v77 = vld [vmem:[#allocation2 + $0x1a0] sm:$0xff]
    %v78 = vld [vmem:[#allocation2 + $0x1a8] sm:$0xff]
    %v79 = vld [vmem:[#allocation2 + $0x1b0] sm:$0xff]
    %v80 = vld [vmem:[#allocation2 + $0x1b8] sm:$0xff]
    %v81 = vld [vmem:[#allocation2 + $0x1c0] sm:$0xff]
    %v82 = vld [vmem:[#allocation2 + $0x1c8] sm:$0xff]
    %v83 = vld [vmem:[#allocation2 + $0x1d0] sm:$0xff]
    %v84 = vld [vmem:[#allocation2 + $0x1d8] sm:$0xff]
    %v85 = vld [vmem:[#allocation2 + $0x1e0] sm:$0xff]
    %v86 = vld [vmem:[#allocation2 + $0x1e8] sm:$0xff]
    %v87 = vld [vmem:[#allocation2 + $0x1f0] sm:$0x1]
    %v88 = vld [vmem:[#allocation2 + $0x1f1] sm:$0x1]
    %v89 = vld [vmem:[#allocation2 + $0x1f8] sm:$0xff]
    %v90 = vld [vmem:[#allocation2 + $0x200] sm:$0xff]
    %v91 = vld [vmem:[#allocation2 + $0x208] sm:$0xff]
    %v92 = vld [vmem:[#allocation2 + $0x210] sm:$0xff]
    %v93 = vld [vmem:[#allocation2 + $0x218] sm:$0xff]
    %v94 = vld [vmem:[#allocation2 + $0x220] sm:$0xff]
    %v95 = vld [vmem:[#allocation2 + $0x228] sm:$0xff]
    %v96 = vld [vmem:[#allocation2 + $0x230] sm:$0xff]
    %v97 = vlaneseq
    %v98 = vshrl.u32 %v97, 7
    %v99 = vsub.s32 0, %v98
    %v100 = vrot.slane %v87, %v99
    %vm101 = vcmask 261120
    %v103 = vsel %vm101, %v23, 0
    %v106 = vsel %vm101, %v24, 0
    %v109 = vsel %vm101, %v25, 0
    %v112 = vsel %vm101, %v26, 0
    %v115 = vsel %vm101, %v27, 0
    %v118 = vsel %vm101, %v28, 0
    %v121 = vsel %vm101, %v29, 0
    %v124 = vsel %vm101, %v30, 0
    %126 = vmatprep.subr.mxu0 0.0
    %127 = vmatpush1.msra.mxu0 %v63
    %128 = vmatprep.subr.mxu0 0.0
    %129 = vmatpush1.msra.mxu0 %v64
    %130 = vmatprep.subr.mxu0 0.0
    %131 = vmatpush1.msra.mxu0 %v65
    %132 = vmatprep.subr.mxu0 0.0
    %133 = vmatpush1.msra.mxu0 %v66
    %134 = vmatprep.subr.mxu0 0.0
    %135 = vmatpush1.msra.mxu0 0.0
    %136 = vmatprep.subr.mxu0 0.0
    %137 = vmatpush1.msra.mxu0 0.0
    %138 = vmatprep.subr.mxu0 0.0
    %139 = vmatpush1.msra.mxu0 0.0
    %140 = vmatprep.subr.mxu0 0.0
    %141 = vmatpush1.msra.mxu0 0.0
    %142 = vmatprep.subr.mxu0 0.0
    %143 = vmatpush1.msra.mxu0 0.0
    %144 = vmatprep.subr.mxu0 0.0
    %145 = vmatpush1.msra.mxu0 0.0
    %146 = vmatprep.subr.mxu0 0.0
    %147 = vmatpush1.msra.mxu0 0.0
    %148 = vmatprep.subr.mxu0 0.0
    %149 = vmatpush1.msra.mxu0 0.0
    %150 = vmatprep.subr.mxu0 0.0
    %151 = vmatpush1.msra.mxu0 0.0
    %152 = vmatprep.subr.mxu0 0.0
    %153 = vmatpush1.msra.mxu0 0.0
    %154 = vmatprep.subr.mxu0 0.0
    %155 = vmatpush1.msra.mxu0 0.0
    %156 = vmatprep.subr.mxu0 0.0
    %157 = vmatpush1.msra.mxu0 0.0
    %158 = vmatprep.subr.mxu0 0.0
    %159 = vmatpush1.msra.mxu0 0.0
    %160 = vmatprep.subr.mxu0 0.0
    %161 = vmatpush1.msra.mxu0 0.0
    %162 = vmatprep.subr.mxu0 0.0
    %163 = vmatpush1.msra.mxu0 0.0
    %164 = vmatprep.subr.mxu0 0.0
    %165 = vmatpush1.msra.mxu0 0.0
    %166 = vmatprep.subr.mxu0 0.0
    %167 = vmatpush1.msra.mxu0 0.0
    %168 = vmatprep.subr.mxu0 0.0
    %169 = vmatpush1.msra.mxu0 0.0
    %170 = vmatprep.subr.mxu0 0.0
    %171 = vmatpush1.msra.mxu0 0.0
    %172 = vmatprep.subr.mxu0 0.0
    %173 = vmatpush1.msra.mxu0 0.0
    %174 = vmatprep.subr.mxu0 0.0
    %175 = vmatpush1.msra.mxu0 0.0
    %176 = vmatprep.subr.mxu0 0.0
    %177 = vmatpush1.msra.mxu0 0.0
    %178 = vmatprep.subr.mxu0 0.0
    %179 = vmatpush1.msra.mxu0 0.0
    %180 = vmatprep.subr.mxu0 0.0
    %181 = vmatpush1.msra.mxu0 0.0
    %182 = vmatprep.subr.mxu0 0.0
    %183 = vmatpush1.msra.mxu0 0.0
    %184 = vmatprep.subr.mxu0 0.0
    %185 = vmatpush1.msra.mxu0 0.0
    %186 = vmatprep.subr.mxu0 0.0
    %187 = vmatpush1.msra.mxu0 0.0
    %188 = vmatprep.subr.mxu0 0.0
    %189 = vmatpush1.msra.mxu0 0.0
    %190 = vmatprep.mubr.f32.mxu0 0.0
    %191 = vmatmul.mubr.f32.gmra.mrb[0].mxu0 %v103
    %v192 = vpop.f32.mrb[0].mxu0
    %v193 = vadd.f32 %v100, %v192
    %v194 = vpop.f32.mrb[0].mxu0
    %195 = vmatprep.mubr.f32.mxu0 0.0
    %196 = vmatmul.mubr.f32.gmra.mrb[0].mxu0 %v106
    %v197 = vpop.f32.mrb[0].mxu0
    %v198 = vadd.f32 %v100, %v197
    %v199 = vpop.f32.mrb[0].mxu0
    %200 = vmatprep.mubr.f32.mxu0 0.0
    %201 = vmatmul.mubr.f32.gmra.mrb[0].mxu0 %v109
    %v202 = vpop.f32.mrb[0].mxu0
    %v203 = vadd.f32 %v100, %v202
    %v204 = vpop.f32.mrb[0].mxu0
    %205 = vmatprep.mubr.f32.mxu0 0.0
    %206 = vmatmul.mubr.f32.gmra.mrb[0].mxu0 %v112
    %v207 = vpop.f32.mrb[0].mxu0
    %v208 = vadd.f32 %v100, %v207
    %v209 = vpop.f32.mrb[0].mxu0
    %210 = vmatprep.mubr.f32.mxu0 0.0
    %211 = vmatmul.mubr.f32.gmra.mrb[0].mxu0 %v115
    %v212 = vpop.f32.mrb[0].mxu0
    %v213 = vadd.f32 %v100, %v212
    %v214 = vpop.f32.mrb[0].mxu0
    %215 = vmatprep.mubr.f32.mxu0 0.0
    %216 = vmatmul.mubr.f32.gmra.mrb[0].mxu0 %v118
    %v217 = vpop.f32.mrb[0].mxu0
    %v218 = vadd.f32 %v100, %v217
    %v219 = vpop.f32.mrb[0].mxu0
    %220 = vmatprep.mubr.f32.mxu0 0.0
    %221 = vmatmul.mubr.f32.gmra.mrb[0].mxu0 %v121
    %v222 = vpop.f32.mrb[0].mxu0
    %v223 = vadd.f32 %v100, %v222
    %v224 = vpop.f32.mrb[0].mxu0
    %225 = vmatprep.mubr.f32.mxu0 0.0
    %226 = vmatmul.mubr.f32.gmra.mrb[0].mxu0 %v124
    %v227 = vpop.f32.mrb[0].mxu0
    %v228 = vadd.f32 %v100, %v227
    %v229 = vpop.f32.mrb[0].mxu0
    %230 = vdwg.mxu0
    %v231 = vmax.f32 %v193, 0.0
    %v232 = vmax.f32 %v198, 0.0
    %v233 = vmax.f32 %v203, 0.0
    %v234 = vmax.f32 %v208, 0.0
    %v235 = vmax.f32 %v213, 0.0
    %v236 = vmax.f32 %v218, 0.0
    %v237 = vmax.f32 %v223, 0.0
    %v238 = vmax.f32 %v228, 0.0
    %v239 = vlaneseq
    %v240 = vshrl.u32 %v239, 7
    %v241 = vsub.s32 0, %v240
    %v242 = vrot.slane %v88, %v241
    %243 = vmatprep.subr.mxu0 0.0
    %244 = vmatpush1.msra.mxu0 %v67
    %245 = vmatprep.subr.mxu0 0.0
    %246 = vmatpush1.msra.mxu0 %v68
    %247 = vmatprep.subr.mxu0 0.0
    %248 = vmatpush1.msra.mxu0 %v69
    %249 = vmatprep.subr.mxu0 0.0
    %250 = vmatpush1.msra.mxu0 %v70
    %251 = vmatprep.subr.mxu0 0.0
    %252 = vmatpush1.msra.mxu0 0.0
    %253 = vmatprep.subr.mxu0 0.0
    %254 = vmatpush1.msra.mxu0 0.0
    %255 = vmatprep.subr.mxu0 0.0
    %256 = vmatpush1.msra.mxu0 0.0
    %257 = vmatprep.subr.mxu0 0.0
    %258 = vmatpush1.msra.mxu0 0.0
    %259 = vmatprep.subr.mxu0 0.0
    %260 = vmatpush1.msra.mxu0 0.0
    %261 = vmatprep.subr.mxu0 0.0
    %262 = vmatpush1.msra.mxu0 0.0
    %263 = vmatprep.subr.mxu0 0.0
    %264 = vmatpush1.msra.mxu0 0.0
    %265 = vmatprep.subr.mxu0 0.0
    %266 = vmatpush1.msra.mxu0 0.0
    %267 = vmatprep.subr.mxu0 0.0
    %268 = vmatpush1.msra.mxu0 0.0
    %269 = vmatprep.subr.mxu0 0.0
    %270 = vmatpush1.msra.mxu0 0.0
    %271 = vmatprep.subr.mxu0 0.0
    %272 = vmatpush1.msra.mxu0 0.0
    %273 = vmatprep.subr.mxu0 0.0
    %274 = vmatpush1.msra.mxu0 0.0
    %275 = vmatprep.subr.mxu0 0.0
    %276 = vmatpush1.msra.mxu0 0.0
    %277 = vmatprep.subr.mxu0 0.0
    %278 = vmatpush1.msra.mxu0 0.0
    %279 = vmatprep.subr.mxu0 0.0
    %280 = vmatpush1.msra.mxu0 0.0
    %281 = vmatprep.subr.mxu0 0.0
    %282 = vmatpush1.msra.mxu0 0.0
    %283 = vmatprep.subr.mxu0 0.0
    %284 = vmatpush1.msra.mxu0 0.0
    %285 = vmatprep.subr.mxu0 0.0
    %286 = vmatpush1.msra.mxu0 0.0
    %287 = vmatprep.subr.mxu0 0.0
    %288 = vmatpush1.msra.mxu0 0.0
    %289 = vmatprep.subr.mxu0 0.0
    %290 = vmatpush1.msra.mxu0 0.0
    %291 = vmatprep.subr.mxu0 0.0
    %292 = vmatpush1.msra.mxu0 0.0
    %293 = vmatprep.subr.mxu0 0.0
    %294 = vmatpush1.msra.mxu0 0.0
    %295 = vmatprep.subr.mxu0 0.0
    %296 = vmatpush1.msra.mxu0 0.0
    %297 = vmatprep.subr.mxu0 0.0
    %298 = vmatpush1.msra.mxu0 0.0
    %299 = vmatprep.subr.mxu0 0.0
    %300 = vmatpush1.msra.mxu0 0.0
    %301 = vmatprep.subr.mxu0 0.0
    %302 = vmatpush1.msra.mxu0 0.0
    %303 = vmatprep.subr.mxu0 0.0
    %304 = vmatpush1.msra.mxu0 0.0
    %305 = vmatprep.subr.mxu0 0.0
    %306 = vmatpush1.msra.mxu0 0.0
    %307 = vmatprep.mubr.f32.mxu0 0.0
    %308 = vmatmul.mubr.f32.gmra.mrb[0].mxu0 %v103
    %v309 = vpop.f32.mrb[0].mxu0
    %v310 = vadd.f32 %v242, %v309
    %v311 = vpop.f32.mrb[0].mxu0
    %312 = vmatprep.mubr.f32.mxu0 0.0
    %313 = vmatmul.mubr.f32.gmra.mrb[0].mxu0 %v106
    %v314 = vpop.f32.mrb[0].mxu0
    %v315 = vadd.f32 %v242, %v314
    %v316 = vpop.f32.mrb[0].mxu0
    %317 = vmatprep.mubr.f32.mxu0 0.0
    %318 = vmatmul.mubr.f32.gmra.mrb[0].mxu0 %v109
    %v319 = vpop.f32.mrb[0].mxu0
    %v320 = vadd.f32 %v242, %v319
    %v321 = vpop.f32.mrb[0].mxu0
    %322 = vmatprep.mubr.f32.mxu0 0.0
    %323 = vmatmul.mubr.f32.gmra.mrb[0].mxu0 %v112
    %v324 = vpop.f32.mrb[0].mxu0
    %v325 = vadd.f32 %v242, %v324
    %v326 = vpop.f32.mrb[0].mxu0
    %327 = vmatprep.mubr.f32.mxu0 0.0
    %328 = vmatmul.mubr.f32.gmra.mrb[0].mxu0 %v115
    %v329 = vpop.f32.mrb[0].mxu0
    %v330 = vadd.f32 %v242, %v329
    %v331 = vpop.f32.mrb[0].mxu0
    %332 = vmatprep.mubr.f32.mxu0 0.0
    %333 = vmatmul.mubr.f32.gmra.mrb[0].mxu0 %v118
    %v334 = vpop.f32.mrb[0].mxu0
    %v335 = vadd.f32 %v242, %v334
    %v336 = vpop.f32.mrb[0].mxu0
    %337 = vmatprep.mubr.f32.mxu0 0.0
    %338 = vmatmul.mubr.f32.gmra.mrb[0].mxu0 %v121
    %v339 = vpop.f32.mrb[0].mxu0
    %v340 = vadd.f32 %v242, %v339
    %v341 = vpop.f32.mrb[0].mxu0
    %342 = vmatprep.mubr.f32.mxu0 0.0
    %343 = vmatmul.mubr.f32.gmra.mrb[0].mxu0 %v124
    %v344 = vpop.f32.mrb[0].mxu0
    %v345 = vadd.f32 %v242, %v344
    %v346 = vpop.f32.mrb[0].mxu0
    %347 = vdwg.mxu0
    %v348 = vmax.f32 %v310, 0.0
    %v349 = vmax.f32 %v315, 0.0
    %v350 = vmax.f32 %v320, 0.0
    %v351 = vmax.f32 %v325, 0.0
    %v352 = vmax.f32 %v330, 0.0
    %v353 = vmax.f32 %v335, 0.0
    %v354 = vmax.f32 %v340, 0.0
    %v355 = vmax.f32 %v345, 0.0
    %vm356 = vcmask 523264
    %v358 = vsel %vm356, %v39, 0
    %v361 = vsel %vm356, %v40, 0
    %v364 = vsel %vm356, %v41, 0
    %v367 = vsel %vm356, %v42, 0
    %v370 = vsel %vm356, %v43, 0
    %v373 = vsel %vm356, %v44, 0
    %v376 = vsel %vm356, %v45, 0
    %v379 = vsel %vm356, %v46, 0
    %381 = vmatprep.subr.mxu0 0.0
    %382 = vmatpush1.msra.mxu0 %v348
    %383 = vmatprep.subr.mxu0 0.0
    %384 = vmatpush1.msra.mxu0 %v349
    %385 = vmatprep.subr.mxu0 0.0
    %386 = vmatpush1.msra.mxu0 %v350
    %387 = vmatprep.subr.mxu0 0.0
    %388 = vmatpush1.msra.mxu0 %v351
    %389 = vmatprep.subr.mxu0 0.0
    %390 = vmatpush1.msra.mxu0 %v352
    %391 = vmatprep.subr.mxu0 0.0
    %392 = vmatpush1.msra.mxu0 %v353
    %393 = vmatprep.subr.mxu0 0.0
    %394 = vmatpush1.msra.mxu0 %v354
    %395 = vmatprep.subr.mxu0 0.0
    %396 = vmatpush1.msra.mxu0 %v355
    %397 = vmatprep.subr.mxu0 0.0
    %398 = vmatpush1.msra.mxu0 0.0
    %399 = vmatprep.subr.mxu0 0.0
    %400 = vmatpush1.msra.mxu0 0.0
    %401 = vmatprep.subr.mxu0 0.0
    %402 = vmatpush1.msra.mxu0 0.0
    %403 = vmatprep.subr.mxu0 0.0
    %404 = vmatpush1.msra.mxu0 0.0
    %405 = vmatprep.subr.mxu0 0.0
    %406 = vmatpush1.msra.mxu0 0.0
    %407 = vmatprep.subr.mxu0 0.0
    %408 = vmatpush1.msra.mxu0 0.0
    %409 = vmatprep.subr.mxu0 0.0
    %410 = vmatpush1.msra.mxu0 0.0
    %411 = vmatprep.subr.mxu0 0.0
    %412 = vmatpush1.msra.mxu0 0.0
    %413 = vmatprep.subr.mxu0 0.0
    %414 = vmatpush1.msra.mxu0 0.0
    %415 = vmatprep.subr.mxu0 0.0
    %416 = vmatpush1.msra.mxu0 0.0
    %417 = vmatprep.subr.mxu0 0.0
    %418 = vmatpush1.msra.mxu0 0.0
    %419 = vmatprep.subr.mxu0 0.0
    %420 = vmatpush1.msra.mxu0 0.0
    %421 = vmatprep.subr.mxu0 0.0
    %422 = vmatpush1.msra.mxu0 0.0
    %423 = vmatprep.subr.mxu0 0.0
    %424 = vmatpush1.msra.mxu0 0.0
    %425 = vmatprep.subr.mxu0 0.0
    %426 = vmatpush1.msra.mxu0 0.0
    %427 = vmatprep.subr.mxu0 0.0
    %428 = vmatpush1.msra.mxu0 0.0
    %429 = vmatprep.subr.mxu0 0.0
    %430 = vmatpush1.msra.mxu0 0.0
    %431 = vmatprep.subr.mxu0 0.0
    %432 = vmatpush1.msra.mxu0 0.0
    %433 = vmatprep.subr.mxu0 0.0
    %434 = vmatpush1.msra.mxu0 0.0
    %435 = vmatprep.subr.mxu0 0.0
    %436 = vmatpush1.msra.mxu0 0.0
    %437 = vmatprep.subr.mxu0 0.0
    %438 = vmatpush1.msra.mxu0 0.0
    %439 = vmatprep.subr.mxu0 0.0
    %440 = vmatpush1.msra.mxu0 0.0
    %441 = vmatprep.subr.mxu0 0.0
    %442 = vmatpush1.msra.mxu0 0.0
    %443 = vmatprep.subr.mxu0 0.0
    %444 = vmatpush1.msra.mxu0 0.0
    %445 = vmatprep.mubr.f32.mxu0 0.0
    %446 = vmatmul.mubr.f32.gmra.mrb[0].mxu0 %v358
    %v447 = vpop.f32.mrb[0].mxu0
    %v448 = vadd.f32 0.0, %v447
    %v449 = vpop.f32.mrb[0].mxu0
    %450 = vmatprep.mubr.f32.mxu0 0.0
    %451 = vmatmul.mubr.f32.gmra.mrb[0].mxu0 %v361
    %v452 = vpop.f32.mrb[0].mxu0
    %v453 = vadd.f32 0.0, %v452
    %v454 = vpop.f32.mrb[0].mxu0
    %455 = vmatprep.mubr.f32.mxu0 0.0
    %456 = vmatmul.mubr.f32.gmra.mrb[0].mxu0 %v364
    %v457 = vpop.f32.mrb[0].mxu0
    %v458 = vadd.f32 0.0, %v457
    %v459 = vpop.f32.mrb[0].mxu0
    %460 = vmatprep.mubr.f32.mxu0 0.0
    %461 = vmatmul.mubr.f32.gmra.mrb[0].mxu0 %v367
    %v462 = vpop.f32.mrb[0].mxu0
    %v463 = vadd.f32 0.0, %v462
    %v464 = vpop.f32.mrb[0].mxu0
    %465 = vmatprep.mubr.f32.mxu0 0.0
    %466 = vmatmul.mubr.f32.gmra.mrb[0].mxu0 %v370
    %v467 = vpop.f32.mrb[0].mxu0
    %v468 = vadd.f32 0.0, %v467
    %v469 = vpop.f32.mrb[0].mxu0
    %470 = vmatprep.mubr.f32.mxu0 0.0
    %471 = vmatmul.mubr.f32.gmra.mrb[0].mxu0 %v373
    %v472 = vpop.f32.mrb[0].mxu0
    %v473 = vadd.f32 0.0, %v472
    %v474 = vpop.f32.mrb[0].mxu0
    %475 = vmatprep.mubr.f32.mxu0 0.0
    %476 = vmatmul.mubr.f32.gmra.mrb[0].mxu0 %v376
    %v477 = vpop.f32.mrb[0].mxu0
    %v478 = vadd.f32 0.0, %v477
    %v479 = vpop.f32.mrb[0].mxu0
    %480 = vmatprep.mubr.f32.mxu0 0.0
    %481 = vmatmul.mubr.f32.gmra.mrb[0].mxu0 %v379
    %v482 = vpop.f32.mrb[0].mxu0
    %v483 = vadd.f32 0.0, %v482
    %v484 = vpop.f32.mrb[0].mxu0
    %485 = vdwg.mxu0
    %v487 = vsel %vm356, %v31, 0
    %v490 = vsel %vm356, %v32, 0
    %v493 = vsel %vm356, %v33, 0
    %v496 = vsel %vm356, %v34, 0
    %v499 = vsel %vm356, %v35, 0
    %v502 = vsel %vm356, %v36, 0
    %v505 = vsel %vm356, %v37, 0
    %v508 = vsel %vm356, %v38, 0
    %510 = vmatprep.subr.mxu0 0.0
    %511 = vmatpush1.msra.mxu0 %v231
    %512 = vmatprep.subr.mxu0 0.0
    %513 = vmatpush1.msra.mxu0 %v232
    %514 = vmatprep.subr.mxu0 0.0
    %515 = vmatpush1.msra.mxu0 %v233
    %516 = vmatprep.subr.mxu0 0.0
    %517 = vmatpush1.msra.mxu0 %v234
    %518 = vmatprep.subr.mxu0 0.0
    %519 = vmatpush1.msra.mxu0 %v235
    %520 = vmatprep.subr.mxu0 0.0
    %521 = vmatpush1.msra.mxu0 %v236
    %522 = vmatprep.subr.mxu0 0.0
    %523 = vmatpush1.msra.mxu0 %v237
    %524 = vmatprep.subr.mxu0 0.0
    %525 = vmatpush1.msra.mxu0 %v238
    %526 = vmatprep.subr.mxu0 0.0
    %527 = vmatpush1.msra.mxu0 0.0
    %528 = vmatprep.subr.mxu0 0.0
    %529 = vmatpush1.msra.mxu0 0.0
    %530 = vmatprep.subr.mxu0 0.0
    %531 = vmatpush1.msra.mxu0 0.0
    %532 = vmatprep.subr.mxu0 0.0
    %533 = vmatpush1.msra.mxu0 0.0
    %534 = vmatprep.subr.mxu0 0.0
    %535 = vmatpush1.msra.mxu0 0.0
    %536 = vmatprep.subr.mxu0 0.0
    %537 = vmatpush1.msra.mxu0 0.0
    %538 = vmatprep.subr.mxu0 0.0
    %539 = vmatpush1.msra.mxu0 0.0
    %540 = vmatprep.subr.mxu0 0.0
    %541 = vmatpush1.msra.mxu0 0.0
    %542 = vmatprep.subr.mxu0 0.0
    %543 = vmatpush1.msra.mxu0 0.0
    %544 = vmatprep.subr.mxu0 0.0
    %545 = vmatpush1.msra.mxu0 0.0
    %546 = vmatprep.subr.mxu0 0.0
    %547 = vmatpush1.msra.mxu0 0.0
    %548 = vmatprep.subr.mxu0 0.0
    %549 = vmatpush1.msra.mxu0 0.0
    %550 = vmatprep.subr.mxu0 0.0
    %551 = vmatpush1.msra.mxu0 0.0
    %552 = vmatprep.subr.mxu0 0.0
    %553 = vmatpush1.msra.mxu0 0.0
    %554 = vmatprep.subr.mxu0 0.0
    %555 = vmatpush1.msra.mxu0 0.0
    %556 = vmatprep.subr.mxu0 0.0
    %557 = vmatpush1.msra.mxu0 0.0
    %558 = vmatprep.subr.mxu0 0.0
    %559 = vmatpush1.msra.mxu0 0.0
    %560 = vmatprep.subr.mxu0 0.0
    %561 = vmatpush1.msra.mxu0 0.0
    %562 = vmatprep.subr.mxu0 0.0
    %563 = vmatpush1.msra.mxu0 0.0
    %564 = vmatprep.subr.mxu0 0.0
    %565 = vmatpush1.msra.mxu0 0.0
    %566 = vmatprep.subr.mxu0 0.0
    %567 = vmatpush1.msra.mxu0 0.0
    %568 = vmatprep.subr.mxu0 0.0
    %569 = vmatpush1.msra.mxu0 0.0
    %570 = vmatprep.subr.mxu0 0.0
    %571 = vmatpush1.msra.mxu0 0.0
    %572 = vmatprep.subr.mxu0 0.0
    %573 = vmatpush1.msra.mxu0 0.0
    %574 = vmatprep.mubr.f32.mxu0 0.0
    %575 = vmatmul.mubr.f32.gmra.mrb[0].mxu0 %v487
    %v576 = vpop.f32.mrb[0].mxu0
    %v577 = vadd.f32 %v448, %v576
    %v578 = vpop.f32.mrb[0].mxu0
    %579 = vmatprep.mubr.f32.mxu0 0.0
    %580 = vmatmul.mubr.f32.gmra.mrb[0].mxu0 %v490
    %v581 = vpop.f32.mrb[0].mxu0
    %v582 = vadd.f32 %v453, %v581
    %v583 = vpop.f32.mrb[0].mxu0
    %584 = vmatprep.mubr.f32.mxu0 0.0
    %585 = vmatmul.mubr.f32.gmra.mrb[0].mxu0 %v493
    %v586 = vpop.f32.mrb[0].mxu0
    %v587 = vadd.f32 %v458, %v586
    %v588 = vpop.f32.mrb[0].mxu0
    %589 = vmatprep.mubr.f32.mxu0 0.0
    %590 = vmatmul.mubr.f32.gmra.mrb[0].mxu0 %v496
    %v591 = vpop.f32.mrb[0].mxu0
    %v592 = vadd.f32 %v463, %v591
    %v593 = vpop.f32.mrb[0].mxu0
    %594 = vmatprep.mubr.f32.mxu0 0.0
    %595 = vmatmul.mubr.f32.gmra.mrb[0].mxu0 %v499
    %v596 = vpop.f32.mrb[0].mxu0
    %v597 = vadd.f32 %v468, %v596
    %v598 = vpop.f32.mrb[0].mxu0
    %599 = vmatprep.mubr.f32.mxu0 0.0
    %600 = vmatmul.mubr.f32.gmra.mrb[0].mxu0 %v502
    %v601 = vpop.f32.mrb[0].mxu0
    %v602 = vadd.f32 %v473, %v601
    %v603 = vpop.f32.mrb[0].mxu0
    %604 = vmatprep.mubr.f32.mxu0 0.0
    %605 = vmatmul.mubr.f32.gmra.mrb[0].mxu0 %v505
    %v606 = vpop.f32.mrb[0].mxu0
    %v607 = vadd.f32 %v478, %v606
    %v608 = vpop.f32.mrb[0].mxu0
    %609 = vmatprep.mubr.f32.mxu0 0.0
    %610 = vmatmul.mubr.f32.gmra.mrb[0].mxu0 %v508
    %v611 = vpop.f32.mrb[0].mxu0
    %v612 = vadd.f32 %v483, %v611
    %v613 = vpop.f32.mrb[0].mxu0
    %614 = vdwg.mxu0
    %v615 = vsel %vm101, %v577, 0.0
    %616 = vadd.xlane.f32.xlu0 %v615
    %v617 = vpop.xlane.xlu0 %616
    %v618 = vsel %vm101, %v582, 0.0
    %619 = vadd.xlane.f32.xlu0 %v618
    %v620 = vpop.xlane.xlu0 %619
    %v621 = vsel %vm101, %v587, 0.0
    %622 = vadd.xlane.f32.xlu0 %v621
    %v623 = vpop.xlane.xlu0 %622
    %v624 = vsel %vm101, %v592, 0.0
    %625 = vadd.xlane.f32.xlu0 %v624
    %v626 = vpop.xlane.xlu0 %625
    %v627 = vsel %vm101, %v597, 0.0
    %628 = vadd.xlane.f32.xlu0 %v627
    %v629 = vpop.xlane.xlu0 %628
    %v630 = vsel %vm101, %v602, 0.0
    %631 = vadd.xlane.f32.xlu0 %v630
    %v632 = vpop.xlane.xlu0 %631
    %v633 = vsel %vm101, %v607, 0.0
    %634 = vadd.xlane.f32.xlu0 %v633
    %v635 = vpop.xlane.xlu0 %634
    %v636 = vsel %vm101, %v612, 0.0
    %637 = vadd.xlane.f32.xlu0 %v636
    %v638 = vpop.xlane.xlu0 %637
    %v639 = vrcp.pop 32.0
    %v640 = vmul.f32 %v617, %v639
    %v641 = vmul.f32 %v620, %v639
    %v642 = vmul.f32 %v623, %v639
    %v643 = vmul.f32 %v626, %v639
    %v644 = vmul.f32 %v629, %v639
    %v645 = vmul.f32 %v632, %v639
    %v646 = vmul.f32 %v635, %v639
    %v647 = vmul.f32 %v638, %v639
    %v648 = vmul.f32 %v577, %v577
    %v649 = vmul.f32 %v582, %v582
    %v650 = vmul.f32 %v587, %v587
    %v651 = vmul.f32 %v592, %v592
    %v652 = vmul.f32 %v597, %v597
    %v653 = vmul.f32 %v602, %v602
    %v654 = vmul.f32 %v607, %v607
    %v655 = vmul.f32 %v612, %v612
    %v656 = vsel %vm101, %v648, 0.0
    %657 = vadd.xlane.f32.xlu0 %v656
    %v658 = vpop.xlane.xlu0 %657
    %v659 = vsel %vm101, %v649, 0.0
    %660 = vadd.xlane.f32.xlu0 %v659
    %v661 = vpop.xlane.xlu0 %660
    %v662 = vsel %vm101, %v650, 0.0
    %663 = vadd.xlane.f32.xlu0 %v662
    %v664 = vpop.xlane.xlu0 %663
    %v665 = vsel %vm101, %v651, 0.0
    %666 = vadd.xlane.f32.xlu0 %v665
    %v667 = vpop.xlane.xlu0 %666
    %v668 = vsel %vm101, %v652, 0.0
    %669 = vadd.xlane.f32.xlu0 %v668
    %v670 = vpop.xlane.xlu0 %669
    %v671 = vsel %vm101, %v653, 0.0
    %672 = vadd.xlane.f32.xlu0 %v671
    %v673 = vpop.xlane.xlu0 %672
    %v674 = vsel %vm101, %v654, 0.0
    %675 = vadd.xlane.f32.xlu0 %v674
    %v676 = vpop.xlane.xlu0 %675
    %v677 = vsel %vm101, %v655, 0.0
    %678 = vadd.xlane.f32.xlu0 %v677
    %v679 = vpop.xlane.xlu0 %678
    %v680 = vmul.f32 %v658, %v639
    %v681 = vmul.f32 %v661, %v639
    %v682 = vmul.f32 %v664, %v639
    %v683 = vmul.f32 %v667, %v639
    %v684 = vmul.f32 %v670, %v639
    %v685 = vmul.f32 %v673, %v639
    %v686 = vmul.f32 %v676, %v639
    %v687 = vmul.f32 %v679, %v639
    %v688 = vsub.f32 %v577, %v640
    %v689 = vsub.f32 %v582, %v641
    %v690 = vsub.f32 %v587, %v642
    %v691 = vsub.f32 %v592, %v643
    %v692 = vsub.f32 %v597, %v644
    %v693 = vsub.f32 %v602, %v645
    %v694 = vsub.f32 %v607, %v646
    %v695 = vsub.f32 %v612, %v647
    %v696 = vmul.f32 %v640, %v640
    %v697 = vmul.f32 %v641, %v641
    %v698 = vmul.f32 %v642, %v642
    %v699 = vmul.f32 %v643, %v643
    %v700 = vmul.f32 %v644, %v644
    %v701 = vmul.f32 %v645, %v645
    %v702 = vmul.f32 %v646, %v646
    %v703 = vmul.f32 %v647, %v647
    %v704 = vsub.f32 %v680, %v696
    %v705 = vsub.f32 %v681, %v697
    %v706 = vsub.f32 %v682, %v698
    %v707 = vsub.f32 %v683, %v699
    %v708 = vsub.f32 %v684, %v700
    %v709 = vsub.f32 %v685, %v701
    %v710 = vsub.f32 %v686, %v702
    %v711 = vsub.f32 %v687, %v703
    %v712 = vadd.f32 %v704, 1e-05
    %v713 = vadd.f32 %v705, 1e-05
    %v714 = vadd.f32 %v706, 1e-05
    %v715 = vadd.f32 %v707, 1e-05
    %v716 = vadd.f32 %v708, 1e-05
    %v717 = vadd.f32 %v709, 1e-05
    %v718 = vadd.f32 %v710, 1e-05
    %v719 = vadd.f32 %v711, 1e-05
    %v720 = vrsqrt.pop %v712
    %v721 = vrsqrt.pop %v713
    %v722 = vrsqrt.pop %v714
    %v723 = vrsqrt.pop %v715
    %v724 = vrsqrt.pop %v716
    %v725 = vrsqrt.pop %v717
    %v726 = vrsqrt.pop %v718
    %v727 = vrsqrt.pop %v719
    %v728 = vmul.f32 %v688, %v720
    %v729 = vmul.f32 %v689, %v721
    %v730 = vmul.f32 %v690, %v722
    %v731 = vmul.f32 %v691, %v723
    %v732 = vmul.f32 %v692, %v724
    %v733 = vmul.f32 %v693, %v725
    %v734 = vmul.f32 %v694, %v726
    %v735 = vmul.f32 %v695, %v727
    %736 = vmatprep.subr.mxu0 0.0
    %737 = vmatpush1.msra.mxu0 %v79
    %738 = vmatprep.subr.mxu0 0.0
    %739 = vmatpush1.msra.mxu0 %v80
    %740 = vmatprep.subr.mxu0 0.0
    %741 = vmatpush1.msra.mxu0 %v81
    %742 = vmatprep.subr.mxu0 0.0
    %743 = vmatpush1.msra.mxu0 %v82
    %744 = vmatprep.subr.mxu0 0.0
    %745 = vmatpush1.msra.mxu0 0.0
    %746 = vmatprep.subr.mxu0 0.0
    %747 = vmatpush1.msra.mxu0 0.0
    %748 = vmatprep.subr.mxu0 0.0
    %749 = vmatpush1.msra.mxu0 0.0
    %750 = vmatprep.subr.mxu0 0.0
    %751 = vmatpush1.msra.mxu0 0.0
    %752 = vmatprep.subr.mxu0 0.0
    %753 = vmatpush1.msra.mxu0 0.0
    %754 = vmatprep.subr.mxu0 0.0
    %755 = vmatpush1.msra.mxu0 0.0
    %756 = vmatprep.subr.mxu0 0.0
    %757 = vmatpush1.msra.mxu0 0.0
    %758 = vmatprep.subr.mxu0 0.0
    %759 = vmatpush1.msra.mxu0 0.0
    %760 = vmatprep.subr.mxu0 0.0
    %761 = vmatpush1.msra.mxu0 0.0
    %762 = vmatprep.subr.mxu0 0.0
    %763 = vmatpush1.msra.mxu0 0.0
    %764 = vmatprep.subr.mxu0 0.0
    %765 = vmatpush1.msra.mxu0 0.0
    %766 = vmatprep.subr.mxu0 0.0
    %767 = vmatpush1.msra.mxu0 0.0
    %768 = vmatprep.subr.mxu0 0.0
    %769 = vmatpush1.msra.mxu0 0.0
    %770 = vmatprep.subr.mxu0 0.0
    %771 = vmatpush1.msra.mxu0 0.0
    %772 = vmatprep.subr.mxu0 0.0
    %773 = vmatpush1.msra.mxu0 0.0
    %774 = vmatprep.subr.mxu0 0.0
    %775 = vmatpush1.msra.mxu0 0.0
    %776 = vmatprep.subr.mxu0 0.0
    %777 = vmatpush1.msra.mxu0 0.0
    %778 = vmatprep.subr.mxu0 0.0
    %779 = vmatpush1.msra.mxu0 0.0
    %780 = vmatprep.subr.mxu0 0.0
    %781 = vmatpush1.msra.mxu0 0.0
    %782 = vmatprep.subr.mxu0 0.0
    %783 = vmatpush1.msra.mxu0 0.0
    %784 = vmatprep.subr.mxu0 0.0
    %785 = vmatpush1.msra.mxu0 0.0
    %786 = vmatprep.subr.mxu0 0.0
    %787 = vmatpush1.msra.mxu0 0.0
    %788 = vmatprep.subr.mxu0 0.0
    %789 = vmatpush1.msra.mxu0 0.0
    %790 = vmatprep.subr.mxu0 0.0
    %791 = vmatpush1.msra.mxu0 0.0
    %792 = vmatprep.subr.mxu0 0.0
    %793 = vmatpush1.msra.mxu0 0.0
    %794 = vmatprep.subr.mxu0 0.0
    %795 = vmatpush1.msra.mxu0 0.0
    %796 = vmatprep.subr.mxu0 0.0
    %797 = vmatpush1.msra.mxu0 0.0
    %798 = vmatprep.subr.mxu0 0.0
    %799 = vmatpush1.msra.mxu0 0.0
    %800 = vmatprep.mubr.f32.mxu0 0.0
    %801 = vmatmul.mubr.f32.gmra.mrb[0].mxu0 %v103
    %v802 = vpop.f32.mrb[0].mxu0
    %v803 = vadd.f32 0.0, %v802
    %v804 = vpop.f32.mrb[0].mxu0
    %805 = vmatprep.mubr.f32.mxu0 0.0
    %806 = vmatmul.mubr.f32.gmra.mrb[0].mxu0 %v106
    %v807 = vpop.f32.mrb[0].mxu0
    %v808 = vadd.f32 0.0, %v807
    %v809 = vpop.f32.mrb[0].mxu0
    %810 = vmatprep.mubr.f32.mxu0 0.0
    %811 = vmatmul.mubr.f32.gmra.mrb[0].mxu0 %v109
    %v812 = vpop.f32.mrb[0].mxu0
    %v813 = vadd.f32 0.0, %v812
    %v814 = vpop.f32.mrb[0].mxu0
    %815 = vmatprep.mubr.f32.mxu0 0.0
    %816 = vmatmul.mubr.f32.gmra.mrb[0].mxu0 %v112
    %v817 = vpop.f32.mrb[0].mxu0
    %v818 = vadd.f32 0.0, %v817
    %v819 = vpop.f32.mrb[0].mxu0
    %820 = vmatprep.mubr.f32.mxu0 0.0
    %821 = vmatmul.mubr.f32.gmra.mrb[0].mxu0 %v115
    %v822 = vpop.f32.mrb[0].mxu0
    %v823 = vadd.f32 0.0, %v822
    %v824 = vpop.f32.mrb[0].mxu0
    %825 = vmatprep.mubr.f32.mxu0 0.0
    %826 = vmatmul.mubr.f32.gmra.mrb[0].mxu0 %v118
    %v827 = vpop.f32.mrb[0].mxu0
    %v828 = vadd.f32 0.0, %v827
    %v829 = vpop.f32.mrb[0].mxu0
    %830 = vmatprep.mubr.f32.mxu0 0.0
    %831 = vmatmul.mubr.f32.gmra.mrb[0].mxu0 %v121
    %v832 = vpop.f32.mrb[0].mxu0
    %v833 = vadd.f32 0.0, %v832
    %v834 = vpop.f32.mrb[0].mxu0
    %835 = vmatprep.mubr.f32.mxu0 0.0
    %836 = vmatmul.mubr.f32.gmra.mrb[0].mxu0 %v124
    %v837 = vpop.f32.mrb[0].mxu0
    %v838 = vadd.f32 0.0, %v837
    %v839 = vpop.f32.mrb[0].mxu0
    %840 = vdwg.mxu0
    %v842 = vsel %vm101, %v728, 0
    %v845 = vsel %vm101, %v729, 0
    %v848 = vsel %vm101, %v730, 0
    %v851 = vsel %vm101, %v731, 0
    %v854 = vsel %vm101, %v732, 0
    %v857 = vsel %vm101, %v733, 0
    %v860 = vsel %vm101, %v734, 0
    %v863 = vsel %vm101, %v735, 0
    %865 = vmatprep.subr.mxu0 0.0
    %866 = vmatpush1.msra.mxu0 %v71
    %867 = vmatprep.subr.mxu0 0.0
    %868 = vmatpush1.msra.mxu0 %v72
    %869 = vmatprep.subr.mxu0 0.0
    %870 = vmatpush1.msra.mxu0 %v73
    %871 = vmatprep.subr.mxu0 0.0
    %872 = vmatpush1.msra.mxu0 %v74
    %873 = vmatprep.subr.mxu0 0.0
    %874 = vmatpush1.msra.mxu0 0.0
    %875 = vmatprep.subr.mxu0 0.0
    %876 = vmatpush1.msra.mxu0 0.0
    %877 = vmatprep.subr.mxu0 0.0
    %878 = vmatpush1.msra.mxu0 0.0
    %879 = vmatprep.subr.mxu0 0.0
    %880 = vmatpush1.msra.mxu0 0.0
    %881 = vmatprep.subr.mxu0 0.0
    %882 = vmatpush1.msra.mxu0 0.0
    %883 = vmatprep.subr.mxu0 0.0
    %884 = vmatpush1.msra.mxu0 0.0
    %885 = vmatprep.subr.mxu0 0.0
    %886 = vmatpush1.msra.mxu0 0.0
    %887 = vmatprep.subr.mxu0 0.0
    %888 = vmatpush1.msra.mxu0 0.0
    %889 = vmatprep.subr.mxu0 0.0
    %890 = vmatpush1.msra.mxu0 0.0
    %891 = vmatprep.subr.mxu0 0.0
    %892 = vmatpush1.msra.mxu0 0.0
    %893 = vmatprep.subr.mxu0 0.0
    %894 = vmatpush1.msra.mxu0 0.0
    %895 = vmatprep.subr.mxu0 0.0
    %896 = vmatpush1.msra.mxu0 0.0
    %897 = vmatprep.subr.mxu0 0.0
    %898 = vmatpush1.msra.mxu0 0.0
    %899 = vmatprep.subr.mxu0 0.0
    %900 = vmatpush1.msra.mxu0 0.0
    %901 = vmatprep.subr.mxu0 0.0
    %902 = vmatpush1.msra.mxu0 0.0
    %903 = vmatprep.subr.mxu0 0.0
    %904 = vmatpush1.msra.mxu0 0.0
    %905 = vmatprep.subr.mxu0 0.0
    %906 = vmatpush1.msra.mxu0 0.0
    %907 = vmatprep.subr.mxu0 0.0
    %908 = vmatpush1.msra.mxu0 0.0
    %909 = vmatprep.subr.mxu0 0.0
    %910 = vmatpush1.msra.mxu0 0.0
    %911 = vmatprep.subr.mxu0 0.0
    %912 = vmatpush1.msra.mxu0 0.0
    %913 = vmatprep.subr.mxu0 0.0
    %914 = vmatpush1.msra.mxu0 0.0
    %915 = vmatprep.subr.mxu0 0.0
    %916 = vmatpush1.msra.mxu0 0.0
    %917 = vmatprep.subr.mxu0 0.0
    %918 = vmatpush1.msra.mxu0 0.0
    %919 = vmatprep.subr.mxu0 0.0
    %920 = vmatpush1.msra.mxu0 0.0
    %921 = vmatprep.subr.mxu0 0.0
    %922 = vmatpush1.msra.mxu0 0.0
    %923 = vmatprep.subr.mxu0 0.0
    %924 = vmatpush1.msra.mxu0 0.0
    %925 = vmatprep.subr.mxu0 0.0
    %926 = vmatpush1.msra.mxu0 0.0
    %927 = vmatprep.subr.mxu0 0.0
    %928 = vmatpush1.msra.mxu0 0.0
    %929 = vmatprep.mubr.f32.mxu0 0.0
    %930 = vmatmul.mubr.f32.gmra.mrb[0].mxu0 %v842
    %v931 = vpop.f32.mrb[0].mxu0
    %v932 = vadd.f32 %v803, %v931
    %v933 = vpop.f32.mrb[0].mxu0
    %934 = vmatprep.mubr.f32.mxu0 0.0
    %935 = vmatmul.mubr.f32.gmra.mrb[0].mxu0 %v845
    %v936 = vpop.f32.mrb[0].mxu0
    %v937 = vadd.f32 %v808, %v936
    %v938 = vpop.f32.mrb[0].mxu0
    %939 = vmatprep.mubr.f32.mxu0 0.0
    %940 = vmatmul.mubr.f32.gmra.mrb[0].mxu0 %v848
    %v941 = vpop.f32.mrb[0].mxu0
    %v942 = vadd.f32 %v813, %v941
    %v943 = vpop.f32.mrb[0].mxu0
    %944 = vmatprep.mubr.f32.mxu0 0.0
    %945 = vmatmul.mubr.f32.gmra.mrb[0].mxu0 %v851
    %v946 = vpop.f32.mrb[0].mxu0
    %v947 = vadd.f32 %v818, %v946
    %v948 = vpop.f32.mrb[0].mxu0
    %949 = vmatprep.mubr.f32.mxu0 0.0
    %950 = vmatmul.mubr.f32.gmra.mrb[0].mxu0 %v854
    %v951 = vpop.f32.mrb[0].mxu0
    %v952 = vadd.f32 %v823, %v951
    %v953 = vpop.f32.mrb[0].mxu0
    %954 = vmatprep.mubr.f32.mxu0 0.0
    %955 = vmatmul.mubr.f32.gmra.mrb[0].mxu0 %v857
    %v956 = vpop.f32.mrb[0].mxu0
    %v957 = vadd.f32 %v828, %v956
    %v958 = vpop.f32.mrb[0].mxu0
    %959 = vmatprep.mubr.f32.mxu0 0.0
    %960 = vmatmul.mubr.f32.gmra.mrb[0].mxu0 %v860
    %v961 = vpop.f32.mrb[0].mxu0
    %v962 = vadd.f32 %v833, %v961
    %v963 = vpop.f32.mrb[0].mxu0
    %964 = vmatprep.mubr.f32.mxu0 0.0
    %965 = vmatmul.mubr.f32.gmra.mrb[0].mxu0 %v863
    %v966 = vpop.f32.mrb[0].mxu0
    %v967 = vadd.f32 %v838, %v966
    %v968 = vpop.f32.mrb[0].mxu0
    %969 = vdwg.mxu0
    %970 = vmatprep.subr.mxu0 0.0
    %971 = vmatpush1.msra.mxu0 %v83
    %972 = vmatprep.subr.mxu0 0.0
    %973 = vmatpush1.msra.mxu0 %v84
    %974 = vmatprep.subr.mxu0 0.0
    %975 = vmatpush1.msra.mxu0 %v85
    %976 = vmatprep.subr.mxu0 0.0
    %977 = vmatpush1.msra.mxu0 %v86
    %978 = vmatprep.subr.mxu0 0.0
    %979 = vmatpush1.msra.mxu0 0.0
    %980 = vmatprep.subr.mxu0 0.0
    %981 = vmatpush1.msra.mxu0 0.0
    %982 = vmatprep.subr.mxu0 0.0
    %983 = vmatpush1.msra.mxu0 0.0
    %984 = vmatprep.subr.mxu0 0.0
    %985 = vmatpush1.msra.mxu0 0.0
    %986 = vmatprep.subr.mxu0 0.0
    %987 = vmatpush1.msra.mxu0 0.0
    %988 = vmatprep.subr.mxu0 0.0
    %989 = vmatpush1.msra.mxu0 0.0
    %990 = vmatprep.subr.mxu0 0.0
    %991 = vmatpush1.msra.mxu0 0.0
    %992 = vmatprep.subr.mxu0 0.0
    %993 = vmatpush1.msra.mxu0 0.0
    %994 = vmatprep.subr.mxu0 0.0
    %995 = vmatpush1.msra.mxu0 0.0
    %996 = vmatprep.subr.mxu0 0.0
    %997 = vmatpush1.msra.mxu0 0.0
    %998 = vmatprep.subr.mxu0 0.0
    %999 = vmatpush1.msra.mxu0 0.0
    %1000 = vmatprep.subr.mxu0 0.0
    %1001 = vmatpush1.msra.mxu0 0.0
    %1002 = vmatprep.subr.mxu0 0.0
    %1003 = vmatpush1.msra.mxu0 0.0
    %1004 = vmatprep.subr.mxu0 0.0
    %1005 = vmatpush1.msra.mxu0 0.0
    %1006 = vmatprep.subr.mxu0 0.0
    %1007 = vmatpush1.msra.mxu0 0.0
    %1008 = vmatprep.subr.mxu0 0.0
    %1009 = vmatpush1.msra.mxu0 0.0
    %1010 = vmatprep.subr.mxu0 0.0
    %1011 = vmatpush1.msra.mxu0 0.0
    %1012 = vmatprep.subr.mxu0 0.0
    %1013 = vmatpush1.msra.mxu0 0.0
    %1014 = vmatprep.subr.mxu0 0.0
    %1015 = vmatpush1.msra.mxu0 0.0
    %1016 = vmatprep.subr.mxu0 0.0
    %1017 = vmatpush1.msra.mxu0 0.0
    %1018 = vmatprep.subr.mxu0 0.0
    %1019 = vmatpush1.msra.mxu0 0.0
    %1020 = vmatprep.subr.mxu0 0.0
    %1021 = vmatpush1.msra.mxu0 0.0
    %1022 = vmatprep.subr.mxu0 0.0
    %1023 = vmatpush1.msra.mxu0 0.0
    %1024 = vmatprep.subr.mxu0 0.0
    %1025 = vmatpush1.msra.mxu0 0.0
    %1026 = vmatprep.subr.mxu0 0.0
    %1027 = vmatpush1.msra.mxu0 0.0
    %1028 = vmatprep.subr.mxu0 0.0
    %1029 = vmatpush1.msra.mxu0 0.0
    %1030 = vmatprep.subr.mxu0 0.0
    %1031 = vmatpush1.msra.mxu0 0.0
    %1032 = vmatprep.subr.mxu0 0.0
    %1033 = vmatpush1.msra.mxu0 0.0
    %1034 = vmatprep.mubr.f32.mxu0 0.0
    %1035 = vmatmul.mubr.f32.gmra.mrb[0].mxu0 %v103
    %v1036 = vpop.f32.mrb[0].mxu0
    %v1037 = vadd.f32 0.0, %v1036
    %v1038 = vpop.f32.mrb[0].mxu0
    %1039 = vmatprep.mubr.f32.mxu0 0.0
    %1040 = vmatmul.mubr.f32.gmra.mrb[0].mxu0 %v106
    %v1041 = vpop.f32.mrb[0].mxu0
    %v1042 = vadd.f32 0.0, %v1041
    %v1043 = vpop.f32.mrb[0].mxu0
    %1044 = vmatprep.mubr.f32.mxu0 0.0
    %1045 = vmatmul.mubr.f32.gmra.mrb[0].mxu0 %v109
    %v1046 = vpop.f32.mrb[0].mxu0
    %v1047 = vadd.f32 0.0, %v1046
    %v1048 = vpop.f32.mrb[0].mxu0
    %1049 = vmatprep.mubr.f32.mxu0 0.0
    %1050 = vmatmul.mubr.f32.gmra.mrb[0].mxu0 %v112
    %v1051 = vpop.f32.mrb[0].mxu0
    %v1052 = vadd.f32 0.0, %v1051
    %v1053 = vpop.f32.mrb[0].mxu0
    %1054 = vmatprep.mubr.f32.mxu0 0.0
    %1055 = vmatmul.mubr.f32.gmra.mrb[0].mxu0 %v115
    %v1056 = vpop.f32.mrb[0].mxu0
    %v1057 = vadd.f32 0.0, %v1056
    %v1058 = vpop.f32.mrb[0].mxu0
    %1059 = vmatprep.mubr.f32.mxu0 0.0
    %1060 = vmatmul.mubr.f32.gmra.mrb[0].mxu0 %v118
    %v1061 = vpop.f32.mrb[0].mxu0
    %v1062 = vadd.f32 0.0, %v1061
    %v1063 = vpop.f32.mrb[0].mxu0
    %1064 = vmatprep.mubr.f32.mxu0 0.0
    %1065 = vmatmul.mubr.f32.gmra.mrb[0].mxu0 %v121
    %v1066 = vpop.f32.mrb[0].mxu0
    %v1067 = vadd.f32 0.0, %v1066
    %v1068 = vpop.f32.mrb[0].mxu0
    %1069 = vmatprep.mubr.f32.mxu0 0.0
    %1070 = vmatmul.mubr.f32.gmra.mrb[0].mxu0 %v124
    %v1071 = vpop.f32.mrb[0].mxu0
    %v1072 = vadd.f32 0.0, %v1071
    %v1073 = vpop.f32.mrb[0].mxu0
    %1074 = vdwg.mxu0
    %1075 = vmatprep.subr.mxu0 0.0
    %1076 = vmatpush1.msra.mxu0 %v75
    %1077 = vmatprep.subr.mxu0 0.0
    %1078 = vmatpush1.msra.mxu0 %v76
    %1079 = vmatprep.subr.mxu0 0.0
    %1080 = vmatpush1.msra.mxu0 %v77
    %1081 = vmatprep.subr.mxu0 0.0
    %1082 = vmatpush1.msra.mxu0 %v78
    %1083 = vmatprep.subr.mxu0 0.0
    %1084 = vmatpush1.msra.mxu0 0.0
    %1085 = vmatprep.subr.mxu0 0.0
    %1086 = vmatpush1.msra.mxu0 0.0
    %1087 = vmatprep.subr.mxu0 0.0
    %1088 = vmatpush1.msra.mxu0 0.0
    %1089 = vmatprep.subr.mxu0 0.0
    %1090 = vmatpush1.msra.mxu0 0.0
    %1091 = vmatprep.subr.mxu0 0.0
    %1092 = vmatpush1.msra.mxu0 0.0
    %1093 = vmatprep.subr.mxu0 0.0
    %1094 = vmatpush1.msra.mxu0 0.0
    %1095 = vmatprep.subr.mxu0 0.0
    %1096 = vmatpush1.msra.mxu0 0.0
    %1097 = vmatprep.subr.mxu0 0.0
    %1098 = vmatpush1.msra.mxu0 0.0
    %1099 = vmatprep.subr.mxu0 0.0
    %1100 = vmatpush1.msra.mxu0 0.0
    %1101 = vmatprep.subr.mxu0 0.0
    %1102 = vmatpush1.msra.mxu0 0.0
    %1103 = vmatprep.subr.mxu0 0.0
    %1104 = vmatpush1.msra.mxu0 0.0
    %1105 = vmatprep.subr.mxu0 0.0
    %1106 = vmatpush1.msra.mxu0 0.0
    %1107 = vmatprep.subr.mxu0 0.0
    %1108 = vmatpush1.msra.mxu0 0.0
    %1109 = vmatprep.subr.mxu0 0.0
    %1110 = vmatpush1.msra.mxu0 0.0
    %1111 = vmatprep.subr.mxu0 0.0
    %1112 = vmatpush1.msra.mxu0 0.0
    %1113 = vmatprep.subr.mxu0 0.0
    %1114 = vmatpush1.msra.mxu0 0.0
    %1115 = vmatprep.subr.mxu0 0.0
    %1116 = vmatpush1.msra.mxu0 0.0
    %1117 = vmatprep.subr.mxu0 0.0
    %1118 = vmatpush1.msra.mxu0 0.0
    %1119 = vmatprep.subr.mxu0 0.0
    %1120 = vmatpush1.msra.mxu0 0.0
    %1121 = vmatprep.subr.mxu0 0.0
    %1122 = vmatpush1.msra.mxu0 0.0
    %1123 = vmatprep.subr.mxu0 0.0
    %1124 = vmatpush1.msra.mxu0 0.0
    %1125 = vmatprep.subr.mxu0 0.0
    %1126 = vmatpush1.msra.mxu0 0.0
    %1127 = vmatprep.subr.mxu0 0.0
    %1128 = vmatpush1.msra.mxu0 0.0
    %1129 = vmatprep.subr.mxu0 0.0
    %1130 = vmatpush1.msra.mxu0 0.0
    %1131 = vmatprep.subr.mxu0 0.0
    %1132 = vmatpush1.msra.mxu0 0.0
    %1133 = vmatprep.subr.mxu0 0.0
    %1134 = vmatpush1.msra.mxu0 0.0
    %1135 = vmatprep.subr.mxu0 0.0
    %1136 = vmatpush1.msra.mxu0 0.0
    %1137 = vmatprep.subr.mxu0 0.0
    %1138 = vmatpush1.msra.mxu0 0.0
    %1139 = vmatprep.mubr.f32.mxu0 0.0
    %1140 = vmatmul.mubr.f32.gmra.mrb[0].mxu0 %v842
    %v1141 = vpop.f32.mrb[0].mxu0
    %v1142 = vadd.f32 %v1037, %v1141
    %v1143 = vpop.f32.mrb[0].mxu0
    %1144 = vmatprep.mubr.f32.mxu0 0.0
    %1145 = vmatmul.mubr.f32.gmra.mrb[0].mxu0 %v845
    %v1146 = vpop.f32.mrb[0].mxu0
    %v1147 = vadd.f32 %v1042, %v1146
    %v1148 = vpop.f32.mrb[0].mxu0
    %1149 = vmatprep.mubr.f32.mxu0 0.0
    %1150 = vmatmul.mubr.f32.gmra.mrb[0].mxu0 %v848
    %v1151 = vpop.f32.mrb[0].mxu0
    %v1152 = vadd.f32 %v1047, %v1151
    %v1153 = vpop.f32.mrb[0].mxu0
    %1154 = vmatprep.mubr.f32.mxu0 0.0
    %1155 = vmatmul.mubr.f32.gmra.mrb[0].mxu0 %v851
    %v1156 = vpop.f32.mrb[0].mxu0
    %v1157 = vadd.f32 %v1052, %v1156
    %v1158 = vpop.f32.mrb[0].mxu0
    %1159 = vmatprep.mubr.f32.mxu0 0.0
    %1160 = vmatmul.mubr.f32.gmra.mrb[0].mxu0 %v854
    %v1161 = vpop.f32.mrb[0].mxu0
    %v1162 = vadd.f32 %v1057, %v1161
    %v1163 = vpop.f32.mrb[0].mxu0
    %1164 = vmatprep.mubr.f32.mxu0 0.0
    %1165 = vmatmul.mubr.f32.gmra.mrb[0].mxu0 %v857
    %v1166 = vpop.f32.mrb[0].mxu0
    %v1167 = vadd.f32 %v1062, %v1166
    %v1168 = vpop.f32.mrb[0].mxu0
    %1169 = vmatprep.mubr.f32.mxu0 0.0
    %1170 = vmatmul.mubr.f32.gmra.mrb[0].mxu0 %v860
    %v1171 = vpop.f32.mrb[0].mxu0
    %v1172 = vadd.f32 %v1067, %v1171
    %v1173 = vpop.f32.mrb[0].mxu0
    %1174 = vmatprep.mubr.f32.mxu0 0.0
    %1175 = vmatmul.mubr.f32.gmra.mrb[0].mxu0 %v863
    %v1176 = vpop.f32.mrb[0].mxu0
    %v1177 = vadd.f32 %v1072, %v1176
    %v1178 = vpop.f32.mrb[0].mxu0
    %1179 = vdwg.mxu0
    %v1180 = vmul.f32 %v55, %v932
    %v1181 = vmul.f32 %v56, %v937
    %v1182 = vmul.f32 %v57, %v942
    %v1183 = vmul.f32 %v58, %v947
    %v1184 = vmul.f32 %v59, %v952
    %v1185 = vmul.f32 %v60, %v957
    %v1186 = vmul.f32 %v61, %v962
    %v1187 = vmul.f32 %v62, %v967
    %v1188 = vmul.f32 %v47, %v1142
    %v1189 = vmul.f32 %v48, %v1147
    %v1190 = vmul.f32 %v49, %v1152
    %v1191 = vmul.f32 %v50, %v1157
    %v1192 = vmul.f32 %v51, %v1162
    %v1193 = vmul.f32 %v52, %v1167
    %v1194 = vmul.f32 %v53, %v1172
    %v1195 = vmul.f32 %v54, %v1177
    %v1196 = vadd.f32 %v1180, %v1188
    %v1197 = vadd.f32 %v1181, %v1189
    %v1198 = vadd.f32 %v1182, %v1190
    %v1199 = vadd.f32 %v1183, %v1191
    %v1200 = vadd.f32 %v1184, %v1192
    %v1201 = vadd.f32 %v1185, %v1193
    %v1202 = vadd.f32 %v1186, %v1194
    %v1203 = vadd.f32 %v1187, %v1195
    %v1204 = vadd.f32 %v1196, %v89
    %v1205 = vadd.f32 %v1197, %v90
    %v1206 = vadd.f32 %v1198, %v91
    %v1207 = vadd.f32 %v1199, %v92
    %v1208 = vadd.f32 %v1200, %v93
    %v1209 = vadd.f32 %v1201, %v94
    %v1210 = vadd.f32 %v1202, %v95
    %v1211 = vadd.f32 %v1203, %v96
    %v1212 = vadd.f32 %v1204, %v23
    %v1213 = vadd.f32 %v1205, %v24
    %v1214 = vadd.f32 %v1206, %v25
    %v1215 = vadd.f32 %v1207, %v26
    %v1216 = vadd.f32 %v1208, %v27
    %v1217 = vadd.f32 %v1209, %v28
    %v1218 = vadd.f32 %v1210, %v29
    %v1219 = vadd.f32 %v1211, %v30
    %v1220 = vld [vmem:[#allocation2 + $0x238] sm:$0xff]
    %v1221 = vld [vmem:[#allocation2 + $0x240] sm:$0xff]
    %v1222 = vld [vmem:[#allocation2 + $0x248] sm:$0xff]
    %v1223 = vld [vmem:[#allocation2 + $0x250] sm:$0xff]
    %v1224 = vld [vmem:[#allocation2 + $0x258] sm:$0xff]
    %v1225 = vld [vmem:[#allocation2 + $0x260] sm:$0xff]
    %v1226 = vld [vmem:[#allocation2 + $0x268] sm:$0xff]
    %v1227 = vld [vmem:[#allocation2 + $0x270] sm:$0xff]
    %v1228 = vld [vmem:[#allocation2 + $0x278] sm:$0xff]
    %v1229 = vld [vmem:[#allocation2 + $0x280] sm:$0xff]
    %v1230 = vld [vmem:[#allocation2 + $0x288] sm:$0xff]
    %v1231 = vld [vmem:[#allocation2 + $0x290] sm:$0xff]
    %v1232 = vld [vmem:[#allocation2 + $0x298] sm:$0xff]
    %v1233 = vld [vmem:[#allocation2 + $0x2a0] sm:$0xff]
    %v1234 = vld [vmem:[#allocation2 + $0x2a8] sm:$0xff]
    %v1235 = vld [vmem:[#allocation2 + $0x2b0] sm:$0xff]
    %v1236 = vld [vmem:[#allocation2 + $0x2b8] sm:$0xff]
    %v1237 = vld [vmem:[#allocation2 + $0x2c0] sm:$0xff]
    %v1238 = vld [vmem:[#allocation2 + $0x2c8] sm:$0xff]
    %v1239 = vld [vmem:[#allocation2 + $0x2d0] sm:$0xff]
    %v1240 = vld [vmem:[#allocation2 + $0x2d8] sm:$0xff]
    %v1241 = vld [vmem:[#allocation2 + $0x2e0] sm:$0xff]
    %v1242 = vld [vmem:[#allocation2 + $0x2e8] sm:$0xff]
    %v1243 = vld [vmem:[#allocation2 + $0x2f0] sm:$0xff]
    %v1244 = vld [vmem:[#allocation2 + $0x2f8] sm:$0x1]
    %v1245 = vld [vmem:[#allocation2 + $0x2f9] sm:$0x1]
    %v1246 = vld [vmem:[#allocation2 + $0x300] sm:$0xff]
    %v1247 = vld [vmem:[#allocation2 + $0x308] sm:$0xff]
    %v1248 = vld [vmem:[#allocation2 + $0x310] sm:$0xff]
    %v1249 = vld [vmem:[#allocation2 + $0x318] sm:$0xff]
    %v1250 = vld [vmem:[#allocation2 + $0x320] sm:$0xff]
    %v1251 = vld [vmem:[#allocation2 + $0x328] sm:$0xff]
    %v1252 = vld [vmem:[#allocation2 + $0x330] sm:$0xff]
    %v1253 = vld [vmem:[#allocation2 + $0x338] sm:$0xff]
    %v1254 = vlaneseq
    %v1255 = vshrl.u32 %v1254, 7
    %v1256 = vsub.s32 0, %v1255
    %v1257 = vrot.slane %v1244, %v1256
    %v1259 = vsel %vm101, %v1212, 0
    %v1262 = vsel %vm101, %v1213, 0
    %v1265 = vsel %vm101, %v1214, 0
    %v1268 = vsel %vm101, %v1215, 0
    %v1271 = vsel %vm101, %v1216, 0
    %v1274 = vsel %vm101, %v1217, 0
    %v1277 = vsel %vm101, %v1218, 0
    %v1280 = vsel %vm101, %v1219, 0
    %1282 = vmatprep.subr.mxu0 0.0
    %1283 = vmatpush1.msra.mxu0 %v1220
    %1284 = vmatprep.subr.mxu0 0.0
    %1285 = vmatpush1.msra.mxu0 %v1221
    %1286 = vmatprep.subr.mxu0 0.0
    %1287 = vmatpush1.msra.mxu0 %v1222
    %1288 = vmatprep.subr.mxu0 0.0
    %1289 = vmatpush1.msra.mxu0 %v1223
    %1290 = vmatprep.subr.mxu0 0.0
    %1291 = vmatpush1.msra.mxu0 0.0
    %1292 = vmatprep.subr.mxu0 0.0
    %1293 = vmatpush1.msra.mxu0 0.0
    %1294 = vmatprep.subr.mxu0 0.0
    %1295 = vmatpush1.msra.mxu0 0.0
    %1296 = vmatprep.subr.mxu0 0.0
    %1297 = vmatpush1.msra.mxu0 0.0
    %1298 = vmatprep.subr.mxu0 0.0
    %1299 = vmatpush1.msra.mxu0 0.0
    %1300 = vmatprep.subr.mxu0 0.0
    %1301 = vmatpush1.msra.mxu0 0.0
    %1302 = vmatprep.subr.mxu0 0.0
    %1303 = vmatpush1.msra.mxu0 0.0
    %1304 = vmatprep.subr.mxu0 0.0
    %1305 = vmatpush1.msra.mxu0 0.0
    %1306 = vmatprep.subr.mxu0 0.0
    %1307 = vmatpush1.msra.mxu0 0.0
    %1308 = vmatprep.subr.mxu0 0.0
    %1309 = vmatpush1.msra.mxu0 0.0
    %1310 = vmatprep.subr.mxu0 0.0
    %1311 = vmatpush1.msra.mxu0 0.0
    %1312 = vmatprep.subr.mxu0 0.0
    %1313 = vmatpush1.msra.mxu0 0.0
    %1314 = vmatprep.subr.mxu0 0.0
    %1315 = vmatpush1.msra.mxu0 0.0
    %1316 = vmatprep.subr.mxu0 0.0
    %1317 = vmatpush1.msra.mxu0 0.0
    %1318 = vmatprep.subr.mxu0 0.0
    %1319 = vmatpush1.msra.mxu0 0.0
    %1320 = vmatprep.subr.mxu0 0.0
    %1321 = vmatpush1.msra.mxu0 0.0
    %1322 = vmatprep.subr.mxu0 0.0
    %1323 = vmatpush1.msra.mxu0 0.0
    %1324 = vmatprep.subr.mxu0 0.0
    %1325 = vmatpush1.msra.mxu0 0.0
    %1326 = vmatprep.subr.mxu0 0.0
    %1327 = vmatpush1.msra.mxu0 0.0
    %1328 = vmatprep.subr.mxu0 0.0
    %1329 = vmatpush1.msra.mxu0 0.0
    %1330 = vmatprep.subr.mxu0 0.0
    %1331 = vmatpush1.msra.mxu0 0.0
    %1332 = vmatprep.subr.mxu0 0.0
    %1333 = vmatpush1.msra.mxu0 0.0
    %1334 = vmatprep.subr.mxu0 0.0
    %1335 = vmatpush1.msra.mxu0 0.0
    %1336 = vmatprep.subr.mxu0 0.0
    %1337 = vmatpush1.msra.mxu0 0.0
    %1338 = vmatprep.subr.mxu0 0.0
    %1339 = vmatpush1.msra.mxu0 0.0
    %1340 = vmatprep.subr.mxu0 0.0
    %1341 = vmatpush1.msra.mxu0 0.0
    %1342 = vmatprep.subr.mxu0 0.0
    %1343 = vmatpush1.msra.mxu0 0.0
    %1344 = vmatprep.subr.mxu0 0.0
    %1345 = vmatpush1.msra.mxu0 0.0
    %1346 = vmatprep.mubr.f32.mxu0 0.0
    %1347 = vmatmul.mubr.f32.gmra.mrb[0].mxu0 %v1259
    %v1348 = vpop.f32.mrb[0].mxu0
    %v1349 = vadd.f32 %v1257, %v1348
    %v1350 = vpop.f32.mrb[0].mxu0
    %1351 = vmatprep.mubr.f32.mxu0 0.0
    %1352 = vmatmul.mubr.f32.gmra.mrb[0].mxu0 %v1262
    %v1353 = vpop.f32.mrb[0].mxu0
    %v1354 = vadd.f32 %v1257, %v1353
    %v1355 = vpop.f32.mrb[0].mxu0
    %1356 = vmatprep.mubr.f32.mxu0 0.0
    %1357 = vmatmul.mubr.f32.gmra.mrb[0].mxu0 %v1265
    %v1358 = vpop.f32.mrb[0].mxu0
    %v1359 = vadd.f32 %v1257, %v1358
    %v1360 = vpop.f32.mrb[0].mxu0
    %1361 = vmatprep.mubr.f32.mxu0 0.0
    %1362 = vmatmul.mubr.f32.gmra.mrb[0].mxu0 %v1268
    %v1363 = vpop.f32.mrb[0].mxu0
    %v1364 = vadd.f32 %v1257, %v1363
    %v1365 = vpop.f32.mrb[0].mxu0
    %1366 = vmatprep.mubr.f32.mxu0 0.0
    %1367 = vmatmul.mubr.f32.gmra.mrb[0].mxu0 %v1271
    %v1368 = vpop.f32.mrb[0].mxu0
    %v1369 = vadd.f32 %v1257, %v1368
    %v1370 = vpop.f32.mrb[0].mxu0
    %1371 = vmatprep.mubr.f32.mxu0 0.0
    %1372 = vmatmul.mubr.f32.gmra.mrb[0].mxu0 %v1274
    %v1373 = vpop.f32.mrb[0].mxu0
    %v1374 = vadd.f32 %v1257, %v1373
    %v1375 = vpop.f32.mrb[0].mxu0
    %1376 = vmatprep.mubr.f32.mxu0 0.0
    %1377 = vmatmul.mubr.f32.gmra.mrb[0].mxu0 %v1277
    %v1378 = vpop.f32.mrb[0].mxu0
    %v1379 = vadd.f32 %v1257, %v1378
    %v1380 = vpop.f32.mrb[0].mxu0
    %1381 = vmatprep.mubr.f32.mxu0 0.0
    %1382 = vmatmul.mubr.f32.gmra.mrb[0].mxu0 %v1280
    %v1383 = vpop.f32.mrb[0].mxu0
    %v1384 = vadd.f32 %v1257, %v1383
    %v1385 = vpop.f32.mrb[0].mxu0
    %1386 = vdwg.mxu0
    %v1387 = vmax.f32 %v1349, 0.0
    %v1388 = vmax.f32 %v1354, 0.0
    %v1389 = vmax.f32 %v1359, 0.0
    %v1390 = vmax.f32 %v1364, 0.0
    %v1391 = vmax.f32 %v1369, 0.0
    %v1392 = vmax.f32 %v1374, 0.0
    %v1393 = vmax.f32 %v1379, 0.0
    %v1394 = vmax.f32 %v1384, 0.0
    %v1395 = vlaneseq
    %v1396 = vshrl.u32 %v1395, 7
    %v1397 = vsub.s32 0, %v1396
    %v1398 = vrot.slane %v1245, %v1397
    %1399 = vmatprep.subr.mxu0 0.0
    %1400 = vmatpush1.msra.mxu0 %v1224
    %1401 = vmatprep.subr.mxu0 0.0
    %1402 = vmatpush1.msra.mxu0 %v1225
    %1403 = vmatprep.subr.mxu0 0.0
    %1404 = vmatpush1.msra.mxu0 %v1226
    %1405 = vmatprep.subr.mxu0 0.0
    %1406 = vmatpush1.msra.mxu0 %v1227
    %1407 = vmatprep.subr.mxu0 0.0
    %1408 = vmatpush1.msra.mxu0 0.0
    %1409 = vmatprep.subr.mxu0 0.0
    %1410 = vmatpush1.msra.mxu0 0.0
    %1411 = vmatprep.subr.mxu0 0.0
    %1412 = vmatpush1.msra.mxu0 0.0
    %1413 = vmatprep.subr.mxu0 0.0
    %1414 = vmatpush1.msra.mxu0 0.0
    %1415 = vmatprep.subr.mxu0 0.0
    %1416 = vmatpush1.msra.mxu0 0.0
    %1417 = vmatprep.subr.mxu0 0.0
    %1418 = vmatpush1.msra.mxu0 0.0
    %1419 = vmatprep.subr.mxu0 0.0
    %1420 = vmatpush1.msra.mxu0 0.0
    %1421 = vmatprep.subr.mxu0 0.0
    %1422 = vmatpush1.msra.mxu0 0.0
    %1423 = vmatprep.subr.mxu0 0.0
    %1424 = vmatpush1.msra.mxu0 0.0
    %1425 = vmatprep.subr.mxu0 0.0
    %1426 = vmatpush1.msra.mxu0 0.0
    %1427 = vmatprep.subr.mxu0 0.0
    %1428 = vmatpush1.msra.mxu0 0.0
    %1429 = vmatprep.subr.mxu0 0.0
    %1430 = vmatpush1.msra.mxu0 0.0
    %1431 = vmatprep.subr.mxu0 0.0
    %1432 = vmatpush1.msra.mxu0 0.0
    %1433 = vmatprep.subr.mxu0 0.0
    %1434 = vmatpush1.msra.mxu0 0.0
    %1435 = vmatprep.subr.mxu0 0.0
    %1436 = vmatpush1.msra.mxu0 0.0
    %1437 = vmatprep.subr.mxu0 0.0
    %1438 = vmatpush1.msra.mxu0 0.0
    %1439 = vmatprep.subr.mxu0 0.0
    %1440 = vmatpush1.msra.mxu0 0.0
    %1441 = vmatprep.subr.mxu0 0.0
    %1442 = vmatpush1.msra.mxu0 0.0
    %1443 = vmatprep.subr.mxu0 0.0
    %1444 = vmatpush1.msra.mxu0 0.0
    %1445 = vmatprep.subr.mxu0 0.0
    %1446 = vmatpush1.msra.mxu0 0.0
    %1447 = vmatprep.subr.mxu0 0.0
    %1448 = vmatpush1.msra.mxu0 0.0
    %1449 = vmatprep.subr.mxu0 0.0
    %1450 = vmatpush1.msra.mxu0 0.0
    %1451 = vmatprep.subr.mxu0 0.0
    %1452 = vmatpush1.msra.mxu0 0.0
    %1453 = vmatprep.subr.mxu0 0.0
    %1454 = vmatpush1.msra.mxu0 0.0
    %1455 = vmatprep.subr.mxu0 0.0
    %1456 = vmatpush1.msra.mxu0 0.0
    %1457 = vmatprep.subr.mxu0 0.0
    %1458 = vmatpush1.msra.mxu0 0.0
    %1459 = vmatprep.subr.mxu0 0.0
    %1460 = vmatpush1.msra.mxu0 0.0
    %1461 = vmatprep.subr.mxu0 0.0
    %1462 = vmatpush1.msra.mxu0 0.0
    %1463 = vmatprep.mubr.f32.mxu0 0.0
    %1464 = vmatmul.mubr.f32.gmra.mrb[0].mxu0 %v1259
    %v1465 = vpop.f32.mrb[0].mxu0
    %v1466 = vadd.f32 %v1398, %v1465
    %v1467 = vpop.f32.mrb[0].mxu0
    %1468 = vmatprep.mubr.f32.mxu0 0.0
    %1469 = vmatmul.mubr.f32.gmra.mrb[0].mxu0 %v1262
    %v1470 = vpop.f32.mrb[0].mxu0
    %v1471 = vadd.f32 %v1398, %v1470
    %v1472 = vpop.f32.mrb[0].mxu0
    %1473 = vmatprep.mubr.f32.mxu0 0.0
    %1474 = vmatmul.mubr.f32.gmra.mrb[0].mxu0 %v1265
    %v1475 = vpop.f32.mrb[0].mxu0
    %v1476 = vadd.f32 %v1398, %v1475
    %v1477 = vpop.f32.mrb[0].mxu0
    %1478 = vmatprep.mubr.f32.mxu0 0.0
    %1479 = vmatmul.mubr.f32.gmra.mrb[0].mxu0 %v1268
    %v1480 = vpop.f32.mrb[0].mxu0
    %v1481 = vadd.f32 %v1398, %v1480
    %v1482 = vpop.f32.mrb[0].mxu0
    %1483 = vmatprep.mubr.f32.mxu0 0.0
    %1484 = vmatmul.mubr.f32.gmra.mrb[0].mxu0 %v1271
    %v1485 = vpop.f32.mrb[0].mxu0
    %v1486 = vadd.f32 %v1398, %v1485
    %v1487 = vpop.f32.mrb[0].mxu0
    %1488 = vmatprep.mubr.f32.mxu0 0.0
    %1489 = vmatmul.mubr.f32.gmra.mrb[0].mxu0 %v1274
    %v1490 = vpop.f32.mrb[0].mxu0
    %v1491 = vadd.f32 %v1398, %v1490
    %v1492 = vpop.f32.mrb[0].mxu0
    %1493 = vmatprep.mubr.f32.mxu0 0.0
    %1494 = vmatmul.mubr.f32.gmra.mrb[0].mxu0 %v1277
    %v1495 = vpop.f32.mrb[0].mxu0
    %v1496 = vadd.f32 %v1398, %v1495
    %v1497 = vpop.f32.mrb[0].mxu0
    %1498 = vmatprep.mubr.f32.mxu0 0.0
    %1499 = vmatmul.mubr.f32.gmra.mrb[0].mxu0 %v1280
    %v1500 = vpop.f32.mrb[0].mxu0
    %v1501 = vadd.f32 %v1398, %v1500
    %v1502 = vpop.f32.mrb[0].mxu0
    %1503 = vdwg.mxu0
    %v1504 = vmax.f32 %v1466, 0.0
    %v1505 = vmax.f32 %v1471, 0.0
    %v1506 = vmax.f32 %v1476, 0.0
    %v1507 = vmax.f32 %v1481, 0.0
    %v1508 = vmax.f32 %v1486, 0.0
    %v1509 = vmax.f32 %v1491, 0.0
    %v1510 = vmax.f32 %v1496, 0.0
    %v1511 = vmax.f32 %v1501, 0.0
    %1512 = vmatprep.subr.mxu0 0.0
    %1513 = vmatpush1.msra.mxu0 %v1504
    %1514 = vmatprep.subr.mxu0 0.0
    %1515 = vmatpush1.msra.mxu0 %v1505
    %1516 = vmatprep.subr.mxu0 0.0
    %1517 = vmatpush1.msra.mxu0 %v1506
    %1518 = vmatprep.subr.mxu0 0.0
    %1519 = vmatpush1.msra.mxu0 %v1507
    %1520 = vmatprep.subr.mxu0 0.0
    %1521 = vmatpush1.msra.mxu0 %v1508
    %1522 = vmatprep.subr.mxu0 0.0
    %1523 = vmatpush1.msra.mxu0 %v1509
    %1524 = vmatprep.subr.mxu0 0.0
    %1525 = vmatpush1.msra.mxu0 %v1510
    %1526 = vmatprep.subr.mxu0 0.0
    %1527 = vmatpush1.msra.mxu0 %v1511
    %1528 = vmatprep.subr.mxu0 0.0
    %1529 = vmatpush1.msra.mxu0 0.0
    %1530 = vmatprep.subr.mxu0 0.0
    %1531 = vmatpush1.msra.mxu0 0.0
    %1532 = vmatprep.subr.mxu0 0.0
    %1533 = vmatpush1.msra.mxu0 0.0
    %1534 = vmatprep.subr.mxu0 0.0
    %1535 = vmatpush1.msra.mxu0 0.0
    %1536 = vmatprep.subr.mxu0 0.0
    %1537 = vmatpush1.msra.mxu0 0.0
    %1538 = vmatprep.subr.mxu0 0.0
    %1539 = vmatpush1.msra.mxu0 0.0
    %1540 = vmatprep.subr.mxu0 0.0
    %1541 = vmatpush1.msra.mxu0 0.0
    %1542 = vmatprep.subr.mxu0 0.0
    %1543 = vmatpush1.msra.mxu0 0.0
    %1544 = vmatprep.subr.mxu0 0.0
    %1545 = vmatpush1.msra.mxu0 0.0
    %1546 = vmatprep.subr.mxu0 0.0
    %1547 = vmatpush1.msra.mxu0 0.0
    %1548 = vmatprep.subr.mxu0 0.0
    %1549 = vmatpush1.msra.mxu0 0.0
    %1550 = vmatprep.subr.mxu0 0.0
    %1551 = vmatpush1.msra.mxu0 0.0
    %1552 = vmatprep.subr.mxu0 0.0
    %1553 = vmatpush1.msra.mxu0 0.0
    %1554 = vmatprep.subr.mxu0 0.0
    %1555 = vmatpush1.msra.mxu0 0.0
    %1556 = vmatprep.subr.mxu0 0.0
    %1557 = vmatpush1.msra.mxu0 0.0
    %1558 = vmatprep.subr.mxu0 0.0
    %1559 = vmatpush1.msra.mxu0 0.0
    %1560 = vmatprep.subr.mxu0 0.0
    %1561 = vmatpush1.msra.mxu0 0.0
    %1562 = vmatprep.subr.mxu0 0.0
    %1563 = vmatpush1.msra.mxu0 0.0
    %1564 = vmatprep.subr.mxu0 0.0
    %1565 = vmatpush1.msra.mxu0 0.0
    %1566 = vmatprep.subr.mxu0 0.0
    %1567 = vmatpush1.msra.mxu0 0.0
    %1568 = vmatprep.subr.mxu0 0.0
    %1569 = vmatpush1.msra.mxu0 0.0
    %1570 = vmatprep.subr.mxu0 0.0
    %1571 = vmatpush1.msra.mxu0 0.0
    %1572 = vmatprep.subr.mxu0 0.0
    %1573 = vmatpush1.msra.mxu0 0.0
    %1574 = vmatprep.subr.mxu0 0.0
    %1575 = vmatpush1.msra.mxu0 0.0
    %1576 = vmatprep.mubr.f32.mxu0 0.0
    %1577 = vmatmul.mubr.f32.gmra.mrb[0].mxu0 %v358
    %v1578 = vpop.f32.mrb[0].mxu0
    %v1579 = vadd.f32 0.0, %v1578
    %v1580 = vpop.f32.mrb[0].mxu0
    %1581 = vmatprep.mubr.f32.mxu0 0.0
    %1582 = vmatmul.mubr.f32.gmra.mrb[0].mxu0 %v361
    %v1583 = vpop.f32.mrb[0].mxu0
    %v1584 = vadd.f32 0.0, %v1583
    %v1585 = vpop.f32.mrb[0].mxu0
    %1586 = vmatprep.mubr.f32.mxu0 0.0
    %1587 = vmatmul.mubr.f32.gmra.mrb[0].mxu0 %v364
    %v1588 = vpop.f32.mrb[0].mxu0
    %v1589 = vadd.f32 0.0, %v1588
    %v1590 = vpop.f32.mrb[0].mxu0
    %1591 = vmatprep.mubr.f32.mxu0 0.0
    %1592 = vmatmul.mubr.f32.gmra.mrb[0].mxu0 %v367
    %v1593 = vpop.f32.mrb[0].mxu0
    %v1594 = vadd.f32 0.0, %v1593
    %v1595 = vpop.f32.mrb[0].mxu0
    %1596 = vmatprep.mubr.f32.mxu0 0.0
    %1597 = vmatmul.mubr.f32.gmra.mrb[0].mxu0 %v370
    %v1598 = vpop.f32.mrb[0].mxu0
    %v1599 = vadd.f32 0.0, %v1598
    %v1600 = vpop.f32.mrb[0].mxu0
    %1601 = vmatprep.mubr.f32.mxu0 0.0
    %1602 = vmatmul.mubr.f32.gmra.mrb[0].mxu0 %v373
    %v1603 = vpop.f32.mrb[0].mxu0
    %v1604 = vadd.f32 0.0, %v1603
    %v1605 = vpop.f32.mrb[0].mxu0
    %1606 = vmatprep.mubr.f32.mxu0 0.0
    %1607 = vmatmul.mubr.f32.gmra.mrb[0].mxu0 %v376
    %v1608 = vpop.f32.mrb[0].mxu0
    %v1609 = vadd.f32 0.0, %v1608
    %v1610 = vpop.f32.mrb[0].mxu0
    %1611 = vmatprep.mubr.f32.mxu0 0.0
    %1612 = vmatmul.mubr.f32.gmra.mrb[0].mxu0 %v379
    %v1613 = vpop.f32.mrb[0].mxu0
    %v1614 = vadd.f32 0.0, %v1613
    %v1615 = vpop.f32.mrb[0].mxu0
    %1616 = vdwg.mxu0
    %1617 = vmatprep.subr.mxu0 0.0
    %1618 = vmatpush1.msra.mxu0 %v1387
    %1619 = vmatprep.subr.mxu0 0.0
    %1620 = vmatpush1.msra.mxu0 %v1388
    %1621 = vmatprep.subr.mxu0 0.0
    %1622 = vmatpush1.msra.mxu0 %v1389
    %1623 = vmatprep.subr.mxu0 0.0
    %1624 = vmatpush1.msra.mxu0 %v1390
    %1625 = vmatprep.subr.mxu0 0.0
    %1626 = vmatpush1.msra.mxu0 %v1391
    %1627 = vmatprep.subr.mxu0 0.0
    %1628 = vmatpush1.msra.mxu0 %v1392
    %1629 = vmatprep.subr.mxu0 0.0
    %1630 = vmatpush1.msra.mxu0 %v1393
    %1631 = vmatprep.subr.mxu0 0.0
    %1632 = vmatpush1.msra.mxu0 %v1394
    %1633 = vmatprep.subr.mxu0 0.0
    %1634 = vmatpush1.msra.mxu0 0.0
    %1635 = vmatprep.subr.mxu0 0.0
    %1636 = vmatpush1.msra.mxu0 0.0
    %1637 = vmatprep.subr.mxu0 0.0
    %1638 = vmatpush1.msra.mxu0 0.0
    %1639 = vmatprep.subr.mxu0 0.0
    %1640 = vmatpush1.msra.mxu0 0.0
    %1641 = vmatprep.subr.mxu0 0.0
    %1642 = vmatpush1.msra.mxu0 0.0
    %1643 = vmatprep.subr.mxu0 0.0
    %1644 = vmatpush1.msra.mxu0 0.0
    %1645 = vmatprep.subr.mxu0 0.0
    %1646 = vmatpush1.msra.mxu0 0.0
    %1647 = vmatprep.subr.mxu0 0.0
    %1648 = vmatpush1.msra.mxu0 0.0
    %1649 = vmatprep.subr.mxu0 0.0
    %1650 = vmatpush1.msra.mxu0 0.0
    %1651 = vmatprep.subr.mxu0 0.0
    %1652 = vmatpush1.msra.mxu0 0.0
    %1653 = vmatprep.subr.mxu0 0.0
    %1654 = vmatpush1.msra.mxu0 0.0
    %1655 = vmatprep.subr.mxu0 0.0
    %1656 = vmatpush1.msra.mxu0 0.0
    %1657 = vmatprep.subr.mxu0 0.0
    %1658 = vmatpush1.msra.mxu0 0.0
    %1659 = vmatprep.subr.mxu0 0.0
    %1660 = vmatpush1.msra.mxu0 0.0
    %1661 = vmatprep.subr.mxu0 0.0
    %1662 = vmatpush1.msra.mxu0 0.0
    %1663 = vmatprep.subr.mxu0 0.0
    %1664 = vmatpush1.msra.mxu0 0.0
    %1665 = vmatprep.subr.mxu0 0.0
    %1666 = vmatpush1.msra.mxu0 0.0
    %1667 = vmatprep.subr.mxu0 0.0
    %1668 = vmatpush1.msra.mxu0 0.0
    %1669 = vmatprep.subr.mxu0 0.0
    %1670 = vmatpush1.msra.mxu0 0.0
    %1671 = vmatprep.subr.mxu0 0.0
    %1672 = vmatpush1.msra.mxu0 0.0
    %1673 = vmatprep.subr.mxu0 0.0
    %1674 = vmatpush1.msra.mxu0 0.0
    %1675 = vmatprep.subr.mxu0 0.0
    %1676 = vmatpush1.msra.mxu0 0.0
    %1677 = vmatprep.subr.mxu0 0.0
    %1678 = vmatpush1.msra.mxu0 0.0
    %1679 = vmatprep.subr.mxu0 0.0
    %1680 = vmatpush1.msra.mxu0 0.0
    %1681 = vmatprep.mubr.f32.mxu0 0.0
    %1682 = vmatmul.mubr.f32.gmra.mrb[0].mxu0 %v487
    %v1683 = vpop.f32.mrb[0].mxu0
    %v1684 = vadd.f32 %v1579, %v1683
    %v1685 = vpop.f32.mrb[0].mxu0
    %1686 = vmatprep.mubr.f32.mxu0 0.0
    %1687 = vmatmul.mubr.f32.gmra.mrb[0].mxu0 %v490
    %v1688 = vpop.f32.mrb[0].mxu0
    %v1689 = vadd.f32 %v1584, %v1688
    %v1690 = vpop.f32.mrb[0].mxu0
    %1691 = vmatprep.mubr.f32.mxu0 0.0
    %1692 = vmatmul.mubr.f32.gmra.mrb[0].mxu0 %v493
    %v1693 = vpop.f32.mrb[0].mxu0
    %v1694 = vadd.f32 %v1589, %v1693
    %v1695 = vpop.f32.mrb[0].mxu0
    %1696 = vmatprep.mubr.f32.mxu0 0.0
    %1697 = vmatmul.mubr.f32.gmra.mrb[0].mxu0 %v496
    %v1698 = vpop.f32.mrb[0].mxu0
    %v1699 = vadd.f32 %v1594, %v1698
    %v1700 = vpop.f32.mrb[0].mxu0
    %1701 = vmatprep.mubr.f32.mxu0 0.0
    %1702 = vmatmul.mubr.f32.gmra.mrb[0].mxu0 %v499
    %v1703 = vpop.f32.mrb[0].mxu0
    %v1704 = vadd.f32 %v1599, %v1703
    %v1705 = vpop.f32.mrb[0].mxu0
    %1706 = vmatprep.mubr.f32.mxu0 0.0
    %1707 = vmatmul.mubr.f32.gmra.mrb[0].mxu0 %v502
    %v1708 = vpop.f32.mrb[0].mxu0
    %v1709 = vadd.f32 %v1604, %v1708
    %v1710 = vpop.f32.mrb[0].mxu0
    %1711 = vmatprep.mubr.f32.mxu0 0.0
    %1712 = vmatmul.mubr.f32.gmra.mrb[0].mxu0 %v505
    %v1713 = vpop.f32.mrb[0].mxu0
    %v1714 = vadd.f32 %v1609, %v1713
    %v1715 = vpop.f32.mrb[0].mxu0
    %1716 = vmatprep.mubr.f32.mxu0 0.0
    %1717 = vmatmul.mubr.f32.gmra.mrb[0].mxu0 %v508
    %v1718 = vpop.f32.mrb[0].mxu0
    %v1719 = vadd.f32 %v1614, %v1718
    %v1720 = vpop.f32.mrb[0].mxu0
    %1721 = vdwg.mxu0
    %v1722 = vsel %vm101, %v1684, 0.0
    %1723 = vadd.xlane.f32.xlu0 %v1722
    %v1724 = vpop.xlane.xlu0 %1723
    %v1725 = vsel %vm101, %v1689, 0.0
    %1726 = vadd.xlane.f32.xlu0 %v1725
    %v1727 = vpop.xlane.xlu0 %1726
    %v1728 = vsel %vm101, %v1694, 0.0
    %1729 = vadd.xlane.f32.xlu0 %v1728
    %v1730 = vpop.xlane.xlu0 %1729
    %v1731 = vsel %vm101, %v1699, 0.0
    %1732 = vadd.xlane.f32.xlu0 %v1731
    %v1733 = vpop.xlane.xlu0 %1732
    %v1734 = vsel %vm101, %v1704, 0.0
    %1735 = vadd.xlane.f32.xlu0 %v1734
    %v1736 = vpop.xlane.xlu0 %1735
    %v1737 = vsel %vm101, %v1709, 0.0
    %1738 = vadd.xlane.f32.xlu0 %v1737
    %v1739 = vpop.xlane.xlu0 %1738
    %v1740 = vsel %vm101, %v1714, 0.0
    %1741 = vadd.xlane.f32.xlu0 %v1740
    %v1742 = vpop.xlane.xlu0 %1741
    %v1743 = vsel %vm101, %v1719, 0.0
    %1744 = vadd.xlane.f32.xlu0 %v1743
    %v1745 = vpop.xlane.xlu0 %1744
    %v1746 = vmul.f32 %v1724, %v639
    %v1747 = vmul.f32 %v1727, %v639
    %v1748 = vmul.f32 %v1730, %v639
    %v1749 = vmul.f32 %v1733, %v639
    %v1750 = vmul.f32 %v1736, %v639
    %v1751 = vmul.f32 %v1739, %v639
    %v1752 = vmul.f32 %v1742, %v639
    %v1753 = vmul.f32 %v1745, %v639
    %v1754 = vmul.f32 %v1684, %v1684
    %v1755 = vmul.f32 %v1689, %v1689
    %v1756 = vmul.f32 %v1694, %v1694
    %v1757 = vmul.f32 %v1699, %v1699
    %v1758 = vmul.f32 %v1704, %v1704
    %v1759 = vmul.f32 %v1709, %v1709
    %v1760 = vmul.f32 %v1714, %v1714
    %v1761 = vmul.f32 %v1719, %v1719
    %v1762 = vsel %vm101, %v1754, 0.0
    %1763 = vadd.xlane.f32.xlu0 %v1762
    %v1764 = vpop.xlane.xlu0 %1763
    %v1765 = vsel %vm101, %v1755, 0.0
    %1766 = vadd.xlane.f32.xlu0 %v1765
    %v1767 = vpop.xlane.xlu0 %1766
    %v1768 = vsel %vm101, %v1756, 0.0
    %1769 = vadd.xlane.f32.xlu0 %v1768
    %v1770 = vpop.xlane.xlu0 %1769
    %v1771 = vsel %vm101, %v1757, 0.0
    %1772 = vadd.xlane.f32.xlu0 %v1771
    %v1773 = vpop.xlane.xlu0 %1772
    %v1774 = vsel %vm101, %v1758, 0.0
    %1775 = vadd.xlane.f32.xlu0 %v1774
    %v1776 = vpop.xlane.xlu0 %1775
    %v1777 = vsel %vm101, %v1759, 0.0
    %1778 = vadd.xlane.f32.xlu0 %v1777
    %v1779 = vpop.xlane.xlu0 %1778
    %v1780 = vsel %vm101, %v1760, 0.0
    %1781 = vadd.xlane.f32.xlu0 %v1780
    %v1782 = vpop.xlane.xlu0 %1781
    %v1783 = vsel %vm101, %v1761, 0.0
    %1784 = vadd.xlane.f32.xlu0 %v1783
    %v1785 = vpop.xlane.xlu0 %1784
    %v1786 = vmul.f32 %v1764, %v639
    %v1787 = vmul.f32 %v1767, %v639
    %v1788 = vmul.f32 %v1770, %v639
    %v1789 = vmul.f32 %v1773, %v639
    %v1790 = vmul.f32 %v1776, %v639
    %v1791 = vmul.f32 %v1779, %v639
    %v1792 = vmul.f32 %v1782, %v639
    %v1793 = vmul.f32 %v1785, %v639
    %v1794 = vsub.f32 %v1684, %v1746
    %v1795 = vsub.f32 %v1689, %v1747
    %v1796 = vsub.f32 %v1694, %v1748
    %v1797 = vsub.f32 %v1699, %v1749
    %v1798 = vsub.f32 %v1704, %v1750
    %v1799 = vsub.f32 %v1709, %v1751
    %v1800 = vsub.f32 %v1714, %v1752
    %v1801 = vsub.f32 %v1719, %v1753
    %v1802 = vmul.f32 %v1746, %v1746
    %v1803 = vmul.f32 %v1747, %v1747
    %v1804 = vmul.f32 %v1748, %v1748
    %v1805 = vmul.f32 %v1749, %v1749
    %v1806 = vmul.f32 %v1750, %v1750
    %v1807 = vmul.f32 %v1751, %v1751
    %v1808 = vmul.f32 %v1752, %v1752
    %v1809 = vmul.f32 %v1753, %v1753
    %v1810 = vsub.f32 %v1786, %v1802
    %v1811 = vsub.f32 %v1787, %v1803
    %v1812 = vsub.f32 %v1788, %v1804
    %v1813 = vsub.f32 %v1789, %v1805
    %v1814 = vsub.f32 %v1790, %v1806
    %v1815 = vsub.f32 %v1791, %v1807
    %v1816 = vsub.f32 %v1792, %v1808
    %v1817 = vsub.f32 %v1793, %v1809
    %v1818 = vadd.f32 %v1810, 1e-05
    %v1819 = vadd.f32 %v1811, 1e-05
    %v1820 = vadd.f32 %v1812, 1e-05
    %v1821 = vadd.f32 %v1813, 1e-05
    %v1822 = vadd.f32 %v1814, 1e-05
    %v1823 = vadd.f32 %v1815, 1e-05
    %v1824 = vadd.f32 %v1816, 1e-05
    %v1825 = vadd.f32 %v1817, 1e-05
    %v1826 = vrsqrt.pop %v1818
    %v1827 = vrsqrt.pop %v1819
    %v1828 = vrsqrt.pop %v1820
    %v1829 = vrsqrt.pop %v1821
    %v1830 = vrsqrt.pop %v1822
    %v1831 = vrsqrt.pop %v1823
    %v1832 = vrsqrt.pop %v1824
    %v1833 = vrsqrt.pop %v1825
    %v1834 = vmul.f32 %v1794, %v1826
    %v1835 = vmul.f32 %v1795, %v1827
    %v1836 = vmul.f32 %v1796, %v1828
    %v1837 = vmul.f32 %v1797, %v1829
    %v1838 = vmul.f32 %v1798, %v1830
    %v1839 = vmul.f32 %v1799, %v1831
    %v1840 = vmul.f32 %v1800, %v1832
    %v1841 = vmul.f32 %v1801, %v1833
    %1842 = vmatprep.subr.mxu0 0.0
    %1843 = vmatpush1.msra.mxu0 %v1236
    %1844 = vmatprep.subr.mxu0 0.0
    %1845 = vmatpush1.msra.mxu0 %v1237
    %1846 = vmatprep.subr.mxu0 0.0
    %1847 = vmatpush1.msra.mxu0 %v1238
    %1848 = vmatprep.subr.mxu0 0.0
    %1849 = vmatpush1.msra.mxu0 %v1239
    %1850 = vmatprep.subr.mxu0 0.0
    %1851 = vmatpush1.msra.mxu0 0.0
    %1852 = vmatprep.subr.mxu0 0.0
    %1853 = vmatpush1.msra.mxu0 0.0
    %1854 = vmatprep.subr.mxu0 0.0
    %1855 = vmatpush1.msra.mxu0 0.0
    %1856 = vmatprep.subr.mxu0 0.0
    %1857 = vmatpush1.msra.mxu0 0.0
    %1858 = vmatprep.subr.mxu0 0.0
    %1859 = vmatpush1.msra.mxu0 0.0
    %1860 = vmatprep.subr.mxu0 0.0
    %1861 = vmatpush1.msra.mxu0 0.0
    %1862 = vmatprep.subr.mxu0 0.0
    %1863 = vmatpush1.msra.mxu0 0.0
    %1864 = vmatprep.subr.mxu0 0.0
    %1865 = vmatpush1.msra.mxu0 0.0
    %1866 = vmatprep.subr.mxu0 0.0
    %1867 = vmatpush1.msra.mxu0 0.0
    %1868 = vmatprep.subr.mxu0 0.0
    %1869 = vmatpush1.msra.mxu0 0.0
    %1870 = vmatprep.subr.mxu0 0.0
    %1871 = vmatpush1.msra.mxu0 0.0
    %1872 = vmatprep.subr.mxu0 0.0
    %1873 = vmatpush1.msra.mxu0 0.0
    %1874 = vmatprep.subr.mxu0 0.0
    %1875 = vmatpush1.msra.mxu0 0.0
    %1876 = vmatprep.subr.mxu0 0.0
    %1877 = vmatpush1.msra.mxu0 0.0
    %1878 = vmatprep.subr.mxu0 0.0
    %1879 = vmatpush1.msra.mxu0 0.0
    %1880 = vmatprep.subr.mxu0 0.0
    %1881 = vmatpush1.msra.mxu0 0.0
    %1882 = vmatprep.subr.mxu0 0.0
    %1883 = vmatpush1.msra.mxu0 0.0
    %1884 = vmatprep.subr.mxu0 0.0
    %1885 = vmatpush1.msra.mxu0 0.0
    %1886 = vmatprep.subr.mxu0 0.0
    %1887 = vmatpush1.msra.mxu0 0.0
    %1888 = vmatprep.subr.mxu0 0.0
    %1889 = vmatpush1.msra.mxu0 0.0
    %1890 = vmatprep.subr.mxu0 0.0
    %1891 = vmatpush1.msra.mxu0 0.0
    %1892 = vmatprep.subr.mxu0 0.0
    %1893 = vmatpush1.msra.mxu0 0.0
    %1894 = vmatprep.subr.mxu0 0.0
    %1895 = vmatpush1.msra.mxu0 0.0
    %1896 = vmatprep.subr.mxu0 0.0
    %1897 = vmatpush1.msra.mxu0 0.0
    %1898 = vmatprep.subr.mxu0 0.0
    %1899 = vmatpush1.msra.mxu0 0.0
    %1900 = vmatprep.subr.mxu0 0.0
    %1901 = vmatpush1.msra.mxu0 0.0
    %1902 = vmatprep.subr.mxu0 0.0
    %1903 = vmatpush1.msra.mxu0 0.0
    %1904 = vmatprep.subr.mxu0 0.0
    %1905 = vmatpush1.msra.mxu0 0.0
    %1906 = vmatprep.mubr.f32.mxu0 0.0
    %1907 = vmatmul.mubr.f32.gmra.mrb[0].mxu0 %v1259
    %v1908 = vpop.f32.mrb[0].mxu0
    %v1909 = vadd.f32 0.0, %v1908
    %v1910 = vpop.f32.mrb[0].mxu0
    %1911 = vmatprep.mubr.f32.mxu0 0.0
    %1912 = vmatmul.mubr.f32.gmra.mrb[0].mxu0 %v1262
    %v1913 = vpop.f32.mrb[0].mxu0
    %v1914 = vadd.f32 0.0, %v1913
    %v1915 = vpop.f32.mrb[0].mxu0
    %1916 = vmatprep.mubr.f32.mxu0 0.0
    %1917 = vmatmul.mubr.f32.gmra.mrb[0].mxu0 %v1265
    %v1918 = vpop.f32.mrb[0].mxu0
    %v1919 = vadd.f32 0.0, %v1918
    %v1920 = vpop.f32.mrb[0].mxu0
    %1921 = vmatprep.mubr.f32.mxu0 0.0
    %1922 = vmatmul.mubr.f32.gmra.mrb[0].mxu0 %v1268
    %v1923 = vpop.f32.mrb[0].mxu0
    %v1924 = vadd.f32 0.0, %v1923
    %v1925 = vpop.f32.mrb[0].mxu0
    %1926 = vmatprep.mubr.f32.mxu0 0.0
    %1927 = vmatmul.mubr.f32.gmra.mrb[0].mxu0 %v1271
    %v1928 = vpop.f32.mrb[0].mxu0
    %v1929 = vadd.f32 0.0, %v1928
    %v1930 = vpop.f32.mrb[0].mxu0
    %1931 = vmatprep.mubr.f32.mxu0 0.0
    %1932 = vmatmul.mubr.f32.gmra.mrb[0].mxu0 %v1274
    %v1933 = vpop.f32.mrb[0].mxu0
    %v1934 = vadd.f32 0.0, %v1933
    %v1935 = vpop.f32.mrb[0].mxu0
    %1936 = vmatprep.mubr.f32.mxu0 0.0
    %1937 = vmatmul.mubr.f32.gmra.mrb[0].mxu0 %v1277
    %v1938 = vpop.f32.mrb[0].mxu0
    %v1939 = vadd.f32 0.0, %v1938
    %v1940 = vpop.f32.mrb[0].mxu0
    %1941 = vmatprep.mubr.f32.mxu0 0.0
    %1942 = vmatmul.mubr.f32.gmra.mrb[0].mxu0 %v1280
    %v1943 = vpop.f32.mrb[0].mxu0
    %v1944 = vadd.f32 0.0, %v1943
    %v1945 = vpop.f32.mrb[0].mxu0
    %1946 = vdwg.mxu0
    %v1948 = vsel %vm101, %v1834, 0
    %v1951 = vsel %vm101, %v1835, 0
    %v1954 = vsel %vm101, %v1836, 0
    %v1957 = vsel %vm101, %v1837, 0
    %v1960 = vsel %vm101, %v1838, 0
    %v1963 = vsel %vm101, %v1839, 0
    %v1966 = vsel %vm101, %v1840, 0
    %v1969 = vsel %vm101, %v1841, 0
    %1971 = vmatprep.subr.mxu0 0.0
    %1972 = vmatpush1.msra.mxu0 %v1228
    %1973 = vmatprep.subr.mxu0 0.0
    %1974 = vmatpush1.msra.mxu0 %v1229
    %1975 = vmatprep.subr.mxu0 0.0
    %1976 = vmatpush1.msra.mxu0 %v1230
    %1977 = vmatprep.subr.mxu0 0.0
    %1978 = vmatpush1.msra.mxu0 %v1231
    %1979 = vmatprep.subr.mxu0 0.0
    %1980 = vmatpush1.msra.mxu0 0.0
    %1981 = vmatprep.subr.mxu0 0.0
    %1982 = vmatpush1.msra.mxu0 0.0
    %1983 = vmatprep.subr.mxu0 0.0
    %1984 = vmatpush1.msra.mxu0 0.0
    %1985 = vmatprep.subr.mxu0 0.0
    %1986 = vmatpush1.msra.mxu0 0.0
    %1987 = vmatprep.subr.mxu0 0.0
    %1988 = vmatpush1.msra.mxu0 0.0
    %1989 = vmatprep.subr.mxu0 0.0
    %1990 = vmatpush1.msra.mxu0 0.0
    %1991 = vmatprep.subr.mxu0 0.0
    %1992 = vmatpush1.msra.mxu0 0.0
    %1993 = vmatprep.subr.mxu0 0.0
    %1994 = vmatpush1.msra.mxu0 0.0
    %1995 = vmatprep.subr.mxu0 0.0
    %1996 = vmatpush1.msra.mxu0 0.0
    %1997 = vmatprep.subr.mxu0 0.0
    %1998 = vmatpush1.msra.mxu0 0.0
    %1999 = vmatprep.subr.mxu0 0.0
    %2000 = vmatpush1.msra.mxu0 0.0
    %2001 = vmatprep.subr.mxu0 0.0
    %2002 = vmatpush1.msra.mxu0 0.0
    %2003 = vmatprep.subr.mxu0 0.0
    %2004 = vmatpush1.msra.mxu0 0.0
    %2005 = vmatprep.subr.mxu0 0.0
    %2006 = vmatpush1.msra.mxu0 0.0
    %2007 = vmatprep.subr.mxu0 0.0
    %2008 = vmatpush1.msra.mxu0 0.0
    %2009 = vmatprep.subr.mxu0 0.0
    %2010 = vmatpush1.msra.mxu0 0.0
    %2011 = vmatprep.subr.mxu0 0.0
    %2012 = vmatpush1.msra.mxu0 0.0
    %2013 = vmatprep.subr.mxu0 0.0
    %2014 = vmatpush1.msra.mxu0 0.0
    %2015 = vmatprep.subr.mxu0 0.0
    %2016 = vmatpush1.msra.mxu0 0.0
    %2017 = vmatprep.subr.mxu0 0.0
    %2018 = vmatpush1.msra.mxu0 0.0
    %2019 = vmatprep.subr.mxu0 0.0
    %2020 = vmatpush1.msra.mxu0 0.0
    %2021 = vmatprep.subr.mxu0 0.0
    %2022 = vmatpush1.msra.mxu0 0.0
    %2023 = vmatprep.subr.mxu0 0.0
    %2024 = vmatpush1.msra.mxu0 0.0
    %2025 = vmatprep.subr.mxu0 0.0
    %2026 = vmatpush1.msra.mxu0 0.0
    %2027 = vmatprep.subr.mxu0 0.0
    %2028 = vmatpush1.msra.mxu0 0.0
    %2029 = vmatprep.subr.mxu0 0.0
    %2030 = vmatpush1.msra.mxu0 0.0
    %2031 = vmatprep.subr.mxu0 0.0
    %2032 = vmatpush1.msra.mxu0 0.0
    %2033 = vmatprep.subr.mxu0 0.0
    %2034 = vmatpush1.msra.mxu0 0.0
    %2035 = vmatprep.mubr.f32.mxu0 0.0
    %2036 = vmatmul.mubr.f32.gmra.mrb[0].mxu0 %v1948
    %v2037 = vpop.f32.mrb[0].mxu0
    %v2038 = vadd.f32 %v1909, %v2037
    %v2039 = vpop.f32.mrb[0].mxu0
    %2040 = vmatprep.mubr.f32.mxu0 0.0
    %2041 = vmatmul.mubr.f32.gmra.mrb[0].mxu0 %v1951
    %v2042 = vpop.f32.mrb[0].mxu0
    %v2043 = vadd.f32 %v1914, %v2042
    %v2044 = vpop.f32.mrb[0].mxu0
    %2045 = vmatprep.mubr.f32.mxu0 0.0
    %2046 = vmatmul.mubr.f32.gmra.mrb[0].mxu0 %v1954
    %v2047 = vpop.f32.mrb[0].mxu0
    %v2048 = vadd.f32 %v1919, %v2047
    %v2049 = vpop.f32.mrb[0].mxu0
    %2050 = vmatprep.mubr.f32.mxu0 0.0
    %2051 = vmatmul.mubr.f32.gmra.mrb[0].mxu0 %v1957
    %v2052 = vpop.f32.mrb[0].mxu0
    %v2053 = vadd.f32 %v1924, %v2052
    %v2054 = vpop.f32.mrb[0].mxu0
    %2055 = vmatprep.mubr.f32.mxu0 0.0
    %2056 = vmatmul.mubr.f32.gmra.mrb[0].mxu0 %v1960
    %v2057 = vpop.f32.mrb[0].mxu0
    %v2058 = vadd.f32 %v1929, %v2057
    %v2059 = vpop.f32.mrb[0].mxu0
    %2060 = vmatprep.mubr.f32.mxu0 0.0
    %2061 = vmatmul.mubr.f32.gmra.mrb[0].mxu0 %v1963
    %v2062 = vpop.f32.mrb[0].mxu0
    %v2063 = vadd.f32 %v1934, %v2062
    %v2064 = vpop.f32.mrb[0].mxu0
    %2065 = vmatprep.mubr.f32.mxu0 0.0
    %2066 = vmatmul.mubr.f32.gmra.mrb[0].mxu0 %v1966
    %v2067 = vpop.f32.mrb[0].mxu0
    %v2068 = vadd.f32 %v1939, %v2067
    %v2069 = vpop.f32.mrb[0].mxu0
    %2070 = vmatprep.mubr.f32.mxu0 0.0
    %2071 = vmatmul.mubr.f32.gmra.mrb[0].mxu0 %v1969
    %v2072 = vpop.f32.mrb[0].mxu0
    %v2073 = vadd.f32 %v1944, %v2072
    %v2074 = vpop.f32.mrb[0].mxu0
    %2075 = vdwg.mxu0
    %2076 = vmatprep.subr.mxu0 0.0
    %2077 = vmatpush1.msra.mxu0 %v1240
    %2078 = vmatprep.subr.mxu0 0.0
    %2079 = vmatpush1.msra.mxu0 %v1241
    %2080 = vmatprep.subr.mxu0 0.0
    %2081 = vmatpush1.msra.mxu0 %v1242
    %2082 = vmatprep.subr.mxu0 0.0
    %2083 = vmatpush1.msra.mxu0 %v1243
    %2084 = vmatprep.subr.mxu0 0.0
    %2085 = vmatpush1.msra.mxu0 0.0
    %2086 = vmatprep.subr.mxu0 0.0
    %2087 = vmatpush1.msra.mxu0 0.0
    %2088 = vmatprep.subr.mxu0 0.0
    %2089 = vmatpush1.msra.mxu0 0.0
    %2090 = vmatprep.subr.mxu0 0.0
    %2091 = vmatpush1.msra.mxu0 0.0
    %2092 = vmatprep.subr.mxu0 0.0
    %2093 = vmatpush1.msra.mxu0 0.0
    %2094 = vmatprep.subr.mxu0 0.0
    %2095 = vmatpush1.msra.mxu0 0.0
    %2096 = vmatprep.subr.mxu0 0.0
    %2097 = vmatpush1.msra.mxu0 0.0
    %2098 = vmatprep.subr.mxu0 0.0
    %2099 = vmatpush1.msra.mxu0 0.0
    %2100 = vmatprep.subr.mxu0 0.0
    %2101 = vmatpush1.msra.mxu0 0.0
    %2102 = vmatprep.subr.mxu0 0.0
    %2103 = vmatpush1.msra.mxu0 0.0
    %2104 = vmatprep.subr.mxu0 0.0
    %2105 = vmatpush1.msra.mxu0 0.0
    %2106 = vmatprep.subr.mxu0 0.0
    %2107 = vmatpush1.msra.mxu0 0.0
    %2108 = vmatprep.subr.mxu0 0.0
    %2109 = vmatpush1.msra.mxu0 0.0
    %2110 = vmatprep.subr.mxu0 0.0
    %2111 = vmatpush1.msra.mxu0 0.0
    %2112 = vmatprep.subr.mxu0 0.0
    %2113 = vmatpush1.msra.mxu0 0.0
    %2114 = vmatprep.subr.mxu0 0.0
    %2115 = vmatpush1.msra.mxu0 0.0
    %2116 = vmatprep.subr.mxu0 0.0
    %2117 = vmatpush1.msra.mxu0 0.0
    %2118 = vmatprep.subr.mxu0 0.0
    %2119 = vmatpush1.msra.mxu0 0.0
    %2120 = vmatprep.subr.mxu0 0.0
    %2121 = vmatpush1.msra.mxu0 0.0
    %2122 = vmatprep.subr.mxu0 0.0
    %2123 = vmatpush1.msra.mxu0 0.0
    %2124 = vmatprep.subr.mxu0 0.0
    %2125 = vmatpush1.msra.mxu0 0.0
    %2126 = vmatprep.subr.mxu0 0.0
    %2127 = vmatpush1.msra.mxu0 0.0
    %2128 = vmatprep.subr.mxu0 0.0
    %2129 = vmatpush1.msra.mxu0 0.0
    %2130 = vmatprep.subr.mxu0 0.0
    %2131 = vmatpush1.msra.mxu0 0.0
    %2132 = vmatprep.subr.mxu0 0.0
    %2133 = vmatpush1.msra.mxu0 0.0
    %2134 = vmatprep.subr.mxu0 0.0
    %2135 = vmatpush1.msra.mxu0 0.0
    %2136 = vmatprep.subr.mxu0 0.0
    %2137 = vmatpush1.msra.mxu0 0.0
    %2138 = vmatprep.subr.mxu0 0.0
    %2139 = vmatpush1.msra.mxu0 0.0
    %2140 = vmatprep.mubr.f32.mxu0 0.0
    %2141 = vmatmul.mubr.f32.gmra.mrb[0].mxu0 %v1259
    %v2142 = vpop.f32.mrb[0].mxu0
    %v2143 = vadd.f32 0.0, %v2142
    %v2144 = vpop.f32.mrb[0].mxu0
    %2145 = vmatprep.mubr.f32.mxu0 0.0
    %2146 = vmatmul.mubr.f32.gmra.mrb[0].mxu0 %v1262
    %v2147 = vpop.f32.mrb[0].mxu0
    %v2148 = vadd.f32 0.0, %v2147
    %v2149 = vpop.f32.mrb[0].mxu0
    %2150 = vmatprep.mubr.f32.mxu0 0.0
    %2151 = vmatmul.mubr.f32.gmra.mrb[0].mxu0 %v1265
    %v2152 = vpop.f32.mrb[0].mxu0
    %v2153 = vadd.f32 0.0, %v2152
    %v2154 = vpop.f32.mrb[0].mxu0
    %2155 = vmatprep.mubr.f32.mxu0 0.0
    %2156 = vmatmul.mubr.f32.gmra.mrb[0].mxu0 %v1268
    %v2157 = vpop.f32.mrb[0].mxu0
    %v2158 = vadd.f32 0.0, %v2157
    %v2159 = vpop.f32.mrb[0].mxu0
    %2160 = vmatprep.mubr.f32.mxu0 0.0
    %2161 = vmatmul.mubr.f32.gmra.mrb[0].mxu0 %v1271
    %v2162 = vpop.f32.mrb[0].mxu0
    %v2163 = vadd.f32 0.0, %v2162
    %v2164 = vpop.f32.mrb[0].mxu0
    %2165 = vmatprep.mubr.f32.mxu0 0.0
    %2166 = vmatmul.mubr.f32.gmra.mrb[0].mxu0 %v1274
    %v2167 = vpop.f32.mrb[0].mxu0
    %v2168 = vadd.f32 0.0, %v2167
    %v2169 = vpop.f32.mrb[0].mxu0
    %2170 = vmatprep.mubr.f32.mxu0 0.0
    %2171 = vmatmul.mubr.f32.gmra.mrb[0].mxu0 %v1277
    %v2172 = vpop.f32.mrb[0].mxu0
    %v2173 = vadd.f32 0.0, %v2172
    %v2174 = vpop.f32.mrb[0].mxu0
    %2175 = vmatprep.mubr.f32.mxu0 0.0
    %2176 = vmatmul.mubr.f32.gmra.mrb[0].mxu0 %v1280
    %v2177 = vpop.f32.mrb[0].mxu0
    %v2178 = vadd.f32 0.0, %v2177
    %v2179 = vpop.f32.mrb[0].mxu0
    %2180 = vdwg.mxu0
    %2181 = vmatprep.subr.mxu0 0.0
    %2182 = vmatpush1.msra.mxu0 %v1232
    %2183 = vmatprep.subr.mxu0 0.0
    %2184 = vmatpush1.msra.mxu0 %v1233
    %2185 = vmatprep.subr.mxu0 0.0
    %2186 = vmatpush1.msra.mxu0 %v1234
    %2187 = vmatprep.subr.mxu0 0.0
    %2188 = vmatpush1.msra.mxu0 %v1235
    %2189 = vmatprep.subr.mxu0 0.0
    %2190 = vmatpush1.msra.mxu0 0.0
    %2191 = vmatprep.subr.mxu0 0.0
    %2192 = vmatpush1.msra.mxu0 0.0
    %2193 = vmatprep.subr.mxu0 0.0
    %2194 = vmatpush1.msra.mxu0 0.0
    %2195 = vmatprep.subr.mxu0 0.0
    %2196 = vmatpush1.msra.mxu0 0.0
    %2197 = vmatprep.subr.mxu0 0.0
    %2198 = vmatpush1.msra.mxu0 0.0
    %2199 = vmatprep.subr.mxu0 0.0
    %2200 = vmatpush1.msra.mxu0 0.0
    %2201 = vmatprep.subr.mxu0 0.0
    %2202 = vmatpush1.msra.mxu0 0.0
    %2203 = vmatprep.subr.mxu0 0.0
    %2204 = vmatpush1.msra.mxu0 0.0
    %2205 = vmatprep.subr.mxu0 0.0
    %2206 = vmatpush1.msra.mxu0 0.0
    %2207 = vmatprep.subr.mxu0 0.0
    %2208 = vmatpush1.msra.mxu0 0.0
    %2209 = vmatprep.subr.mxu0 0.0
    %2210 = vmatpush1.msra.mxu0 0.0
    %2211 = vmatprep.subr.mxu0 0.0
    %2212 = vmatpush1.msra.mxu0 0.0
    %2213 = vmatprep.subr.mxu0 0.0
    %2214 = vmatpush1.msra.mxu0 0.0
    %2215 = vmatprep.subr.mxu0 0.0
    %2216 = vmatpush1.msra.mxu0 0.0
    %2217 = vmatprep.subr.mxu0 0.0
    %2218 = vmatpush1.msra.mxu0 0.0
    %2219 = vmatprep.subr.mxu0 0.0
    %2220 = vmatpush1.msra.mxu0 0.0
    %2221 = vmatprep.subr.mxu0 0.0
    %2222 = vmatpush1.msra.mxu0 0.0
    %2223 = vmatprep.subr.mxu0 0.0
    %2224 = vmatpush1.msra.mxu0 0.0
    %2225 = vmatprep.subr.mxu0 0.0
    %2226 = vmatpush1.msra.mxu0 0.0
    %2227 = vmatprep.subr.mxu0 0.0
    %2228 = vmatpush1.msra.mxu0 0.0
    %2229 = vmatprep.subr.mxu0 0.0
    %2230 = vmatpush1.msra.mxu0 0.0
    %2231 = vmatprep.subr.mxu0 0.0
    %2232 = vmatpush1.msra.mxu0 0.0
    %2233 = vmatprep.subr.mxu0 0.0
    %2234 = vmatpush1.msra.mxu0 0.0
    %2235 = vmatprep.subr.mxu0 0.0
    %2236 = vmatpush1.msra.mxu0 0.0
    %2237 = vmatprep.subr.mxu0 0.0
    %2238 = vmatpush1.msra.mxu0 0.0
    %2239 = vmatprep.subr.mxu0 0.0
    %2240 = vmatpush1.msra.mxu0 0.0
    %2241 = vmatprep.subr.mxu0 0.0
    %2242 = vmatpush1.msra.mxu0 0.0
    %2243 = vmatprep.subr.mxu0 0.0
    %2244 = vmatpush1.msra.mxu0 0.0
    %2245 = vmatprep.mubr.f32.mxu0 0.0
    %2246 = vmatmul.mubr.f32.gmra.mrb[0].mxu0 %v1948
    %v2247 = vpop.f32.mrb[0].mxu0
    %v2248 = vadd.f32 %v2143, %v2247
    %v2249 = vpop.f32.mrb[0].mxu0
    %2250 = vmatprep.mubr.f32.mxu0 0.0
    %2251 = vmatmul.mubr.f32.gmra.mrb[0].mxu0 %v1951
    %v2252 = vpop.f32.mrb[0].mxu0
    %v2253 = vadd.f32 %v2148, %v2252
    %v2254 = vpop.f32.mrb[0].mxu0
    %2255 = vmatprep.mubr.f32.mxu0 0.0
    %2256 = vmatmul.mubr.f32.gmra.mrb[0].mxu0 %v1954
    %v2257 = vpop.f32.mrb[0].mxu0
    %v2258 = vadd.f32 %v2153, %v2257
    %v2259 = vpop.f32.mrb[0].mxu0
    %2260 = vmatprep.mubr.f32.mxu0 0.0
    %2261 = vmatmul.mubr.f32.gmra.mrb[0].mxu0 %v1957
    %v2262 = vpop.f32.mrb[0].mxu0
    %v2263 = vadd.f32 %v2158, %v2262
    %v2264 = vpop.f32.mrb[0].mxu0
    %2265 = vmatprep.mubr.f32.mxu0 0.0
    %2266 = vmatmul.mubr.f32.gmra.mrb[0].mxu0 %v1960
    %v2267 = vpop.f32.mrb[0].mxu0
    %v2268 = vadd.f32 %v2163, %v2267
    %v2269 = vpop.f32.mrb[0].mxu0
    %2270 = vmatprep.mubr.f32.mxu0 0.0
    %2271 = vmatmul.mubr.f32.gmra.mrb[0].mxu0 %v1963
    %v2272 = vpop.f32.mrb[0].mxu0
    %v2273 = vadd.f32 %v2168, %v2272
    %v2274 = vpop.f32.mrb[0].mxu0
    %2275 = vmatprep.mubr.f32.mxu0 0.0
    %2276 = vmatmul.mubr.f32.gmra.mrb[0].mxu0 %v1966
    %v2277 = vpop.f32.mrb[0].mxu0
    %v2278 = vadd.f32 %v2173, %v2277
    %v2279 = vpop.f32.mrb[0].mxu0
    %2280 = vmatprep.mubr.f32.mxu0 0.0
    %2281 = vmatmul.mubr.f32.gmra.mrb[0].mxu0 %v1969
    %v2282 = vpop.f32.mrb[0].mxu0
    %v2283 = vadd.f32 %v2178, %v2282
    %v2284 = vpop.f32.mrb[0].mxu0
    %2285 = vdwg.mxu0
    %v2286 = vmul.f32 %v55, %v2038
    %v2287 = vmul.f32 %v56, %v2043
    %v2288 = vmul.f32 %v57, %v2048
    %v2289 = vmul.f32 %v58, %v2053
    %v2290 = vmul.f32 %v59, %v2058
    %v2291 = vmul.f32 %v60, %v2063
    %v2292 = vmul.f32 %v61, %v2068
    %v2293 = vmul.f32 %v62, %v2073
    %v2294 = vmul.f32 %v47, %v2248
    %v2295 = vmul.f32 %v48, %v2253
    %v2296 = vmul.f32 %v49, %v2258
    %v2297 = vmul.f32 %v50, %v2263
    %v2298 = vmul.f32 %v51, %v2268
    %v2299 = vmul.f32 %v52, %v2273
    %v2300 = vmul.f32 %v53, %v2278
    %v2301 = vmul.f32 %v54, %v2283
    %v2302 = vadd.f32 %v2286, %v2294
    %v2303 = vadd.f32 %v2287, %v2295
    %v2304 = vadd.f32 %v2288, %v2296
    %v2305 = vadd.f32 %v2289, %v2297
    %v2306 = vadd.f32 %v2290, %v2298
    %v2307 = vadd.f32 %v2291, %v2299
    %v2308 = vadd.f32 %v2292, %v2300
    %v2309 = vadd.f32 %v2293, %v2301
    %v2310 = vadd.f32 %v2302, %v1246
    %v2311 = vadd.f32 %v2303, %v1247
    %v2312 = vadd.f32 %v2304, %v1248
    %v2313 = vadd.f32 %v2305, %v1249
    %v2314 = vadd.f32 %v2306, %v1250
    %v2315 = vadd.f32 %v2307, %v1251
    %v2316 = vadd.f32 %v2308, %v1252
    %v2317 = vadd.f32 %v2309, %v1253
    %v2318 = vadd.f32 %v2310, %v1212
    %v2319 = vadd.f32 %v2311, %v1213
    %v2320 = vadd.f32 %v2312, %v1214
    %v2321 = vadd.f32 %v2313, %v1215
    %v2322 = vadd.f32 %v2314, %v1216
    %v2323 = vadd.f32 %v2315, %v1217
    %v2324 = vadd.f32 %v2316, %v1218
    %v2325 = vadd.f32 %v2317, %v1219
    %v2326 = vld [vmem:[#allocation2 + $0x108] sm:$0xff]
    %v2327 = vld [vmem:[#allocation2 + $0x110] sm:$0xff]
    %v2328 = vld [vmem:[#allocation2 + $0x118] sm:$0xff]
    %v2329 = vld [vmem:[#allocation2 + $0x120] sm:$0xff]
    %v2330 = vld [vmem:[#allocation2 + $0x128] sm:$0x1]
    %v2331 = vld [vmem:[#allocation2 + $0x100] sm:$0xff]
    %v2333 = vsel %vm101, %v2318, 0
    %v2336 = vsel %vm101, %v2319, 0
    %v2339 = vsel %vm101, %v2320, 0
    %v2342 = vsel %vm101, %v2321, 0
    %v2345 = vsel %vm101, %v2322, 0
    %v2348 = vsel %vm101, %v2323, 0
    %v2351 = vsel %vm101, %v2324, 0
    %v2354 = vsel %vm101, %v2325, 0
    %2356 = vmatprep.subr.mxu0 0.0
    %2357 = vmatpush1.msra.mxu0 %v2326
    %2358 = vmatprep.subr.mxu0 0.0
    %2359 = vmatpush1.msra.mxu0 %v2327
    %2360 = vmatprep.subr.mxu0 0.0
    %2361 = vmatpush1.msra.mxu0 %v2328
    %2362 = vmatprep.subr.mxu0 0.0
    %2363 = vmatpush1.msra.mxu0 %v2329
    %2364 = vmatprep.subr.mxu0 0.0
    %2365 = vmatpush1.msra.mxu0 0.0
    %2366 = vmatprep.subr.mxu0 0.0
    %2367 = vmatpush1.msra.mxu0 0.0
    %2368 = vmatprep.subr.mxu0 0.0
    %2369 = vmatpush1.msra.mxu0 0.0
    %2370 = vmatprep.subr.mxu0 0.0
    %2371 = vmatpush1.msra.mxu0 0.0
    %2372 = vmatprep.subr.mxu0 0.0
    %2373 = vmatpush1.msra.mxu0 0.0
    %2374 = vmatprep.subr.mxu0 0.0
    %2375 = vmatpush1.msra.mxu0 0.0
    %2376 = vmatprep.subr.mxu0 0.0
    %2377 = vmatpush1.msra.mxu0 0.0
    %2378 = vmatprep.subr.mxu0 0.0
    %2379 = vmatpush1.msra.mxu0 0.0
    %2380 = vmatprep.subr.mxu0 0.0
    %2381 = vmatpush1.msra.mxu0 0.0
    %2382 = vmatprep.subr.mxu0 0.0
    %2383 = vmatpush1.msra.mxu0 0.0
    %2384 = vmatprep.subr.mxu0 0.0
    %2385 = vmatpush1.msra.mxu0 0.0
    %2386 = vmatprep.subr.mxu0 0.0
    %2387 = vmatpush1.msra.mxu0 0.0
    %2388 = vmatprep.subr.mxu0 0.0
    %2389 = vmatpush1.msra.mxu0 0.0
    %2390 = vmatprep.subr.mxu0 0.0
    %2391 = vmatpush1.msra.mxu0 0.0
    %2392 = vmatprep.subr.mxu0 0.0
    %2393 = vmatpush1.msra.mxu0 0.0
    %2394 = vmatprep.subr.mxu0 0.0
    %2395 = vmatpush1.msra.mxu0 0.0
    %2396 = vmatprep.subr.mxu0 0.0
    %2397 = vmatpush1.msra.mxu0 0.0
    %2398 = vmatprep.subr.mxu0 0.0
    %2399 = vmatpush1.msra.mxu0 0.0
    %2400 = vmatprep.subr.mxu0 0.0
    %2401 = vmatpush1.msra.mxu0 0.0
    %2402 = vmatprep.subr.mxu0 0.0
    %2403 = vmatpush1.msra.mxu0 0.0
    %2404 = vmatprep.subr.mxu0 0.0
    %2405 = vmatpush1.msra.mxu0 0.0
    %2406 = vmatprep.subr.mxu0 0.0
    %2407 = vmatpush1.msra.mxu0 0.0
    %2408 = vmatprep.subr.mxu0 0.0
    %2409 = vmatpush1.msra.mxu0 0.0
    %2410 = vmatprep.subr.mxu0 0.0
    %2411 = vmatpush1.msra.mxu0 0.0
    %2412 = vmatprep.subr.mxu0 0.0
    %2413 = vmatpush1.msra.mxu0 0.0
    %2414 = vmatprep.subr.mxu0 0.0
    %2415 = vmatpush1.msra.mxu0 0.0
    %2416 = vmatprep.subr.mxu0 0.0
    %2417 = vmatpush1.msra.mxu0 0.0
    %2418 = vmatprep.subr.mxu0 0.0
    %2419 = vmatpush1.msra.mxu0 0.0
    %2420 = vmatprep.mubr.f32.mxu0 0.0
    %2421 = vmatmul.mubr.f32.gmra.mrb[0].mxu0 %v2333
    %v2422 = vpop.f32.mrb[0].mxu0
    %v2423 = vadd.f32 0.0, %v2422
    %v2424 = vpop.f32.mrb[0].mxu0
    %2425 = vmatprep.mubr.f32.mxu0 0.0
    %2426 = vmatmul.mubr.f32.gmra.mrb[0].mxu0 %v2336
    %v2427 = vpop.f32.mrb[0].mxu0
    %v2428 = vadd.f32 0.0, %v2427
    %v2429 = vpop.f32.mrb[0].mxu0
    %2430 = vmatprep.mubr.f32.mxu0 0.0
    %2431 = vmatmul.mubr.f32.gmra.mrb[0].mxu0 %v2339
    %v2432 = vpop.f32.mrb[0].mxu0
    %v2433 = vadd.f32 0.0, %v2432
    %v2434 = vpop.f32.mrb[0].mxu0
    %2435 = vmatprep.mubr.f32.mxu0 0.0
    %2436 = vmatmul.mubr.f32.gmra.mrb[0].mxu0 %v2342
    %v2437 = vpop.f32.mrb[0].mxu0
    %v2438 = vadd.f32 0.0, %v2437
    %v2439 = vpop.f32.mrb[0].mxu0
    %2440 = vmatprep.mubr.f32.mxu0 0.0
    %2441 = vmatmul.mubr.f32.gmra.mrb[0].mxu0 %v2345
    %v2442 = vpop.f32.mrb[0].mxu0
    %v2443 = vadd.f32 0.0, %v2442
    %v2444 = vpop.f32.mrb[0].mxu0
    %2445 = vmatprep.mubr.f32.mxu0 0.0
    %2446 = vmatmul.mubr.f32.gmra.mrb[0].mxu0 %v2348
    %v2447 = vpop.f32.mrb[0].mxu0
    %v2448 = vadd.f32 0.0, %v2447
    %v2449 = vpop.f32.mrb[0].mxu0
    %2450 = vmatprep.mubr.f32.mxu0 0.0
    %2451 = vmatmul.mubr.f32.gmra.mrb[0].mxu0 %v2351
    %v2452 = vpop.f32.mrb[0].mxu0
    %v2453 = vadd.f32 0.0, %v2452
    %v2454 = vpop.f32.mrb[0].mxu0
    %2455 = vmatprep.mubr.f32.mxu0 0.0
    %2456 = vmatmul.mubr.f32.gmra.mrb[0].mxu0 %v2354
    %v2457 = vpop.f32.mrb[0].mxu0
    %v2458 = vadd.f32 0.0, %v2457
    %v2459 = vpop.f32.mrb[0].mxu0
    %2460 = vdwg.mxu0
    %v2461 = vlaneseq
    %v2462 = vshrl.u32 %v2461, 7
    %v2463 = vsub.s32 0, %v2462
    %v2464 = vrot.slane %v2330, %v2463
    %v2466 = vsel %vm356, %v2331, 0
    %2468 = vmatprep.subr.mxu0 0.0
    %2469 = vmatpush1.msra.mxu0 %v2423
    %2470 = vmatprep.subr.mxu0 0.0
    %2471 = vmatpush1.msra.mxu0 %v2428
    %2472 = vmatprep.subr.mxu0 0.0
    %2473 = vmatpush1.msra.mxu0 %v2433
    %2474 = vmatprep.subr.mxu0 0.0
    %2475 = vmatpush1.msra.mxu0 %v2438
    %2476 = vmatprep.subr.mxu0 0.0
    %2477 = vmatpush1.msra.mxu0 %v2443
    %2478 = vmatprep.subr.mxu0 0.0
    %2479 = vmatpush1.msra.mxu0 %v2448
    %2480 = vmatprep.subr.mxu0 0.0
    %2481 = vmatpush1.msra.mxu0 %v2453
    %2482 = vmatprep.subr.mxu0 0.0
    %2483 = vmatpush1.msra.mxu0 %v2458
    %2484 = vmatprep.subr.mxu0 0.0
    %2485 = vmatpush1.msra.mxu0 0.0
    %2486 = vmatprep.subr.mxu0 0.0
    %2487 = vmatpush1.msra.mxu0 0.0
    %2488 = vmatprep.subr.mxu0 0.0
    %2489 = vmatpush1.msra.mxu0 0.0
    %2490 = vmatprep.subr.mxu0 0.0
    %2491 = vmatpush1.msra.mxu0 0.0
    %2492 = vmatprep.subr.mxu0 0.0
    %2493 = vmatpush1.msra.mxu0 0.0
    %2494 = vmatprep.subr.mxu0 0.0
    %2495 = vmatpush1.msra.mxu0 0.0
    %2496 = vmatprep.subr.mxu0 0.0
    %2497 = vmatpush1.msra.mxu0 0.0
    %2498 = vmatprep.subr.mxu0 0.0
    %2499 = vmatpush1.msra.mxu0 0.0
    %2500 = vmatprep.subr.mxu0 0.0
    %2501 = vmatpush1.msra.mxu0 0.0
    %2502 = vmatprep.subr.mxu0 0.0
    %2503 = vmatpush1.msra.mxu0 0.0
    %2504 = vmatprep.subr.mxu0 0.0
    %2505 = vmatpush1.msra.mxu0 0.0
    %2506 = vmatprep.subr.mxu0 0.0
    %2507 = vmatpush1.msra.mxu0 0.0
    %2508 = vmatprep.subr.mxu0 0.0
    %2509 = vmatpush1.msra.mxu0 0.0
    %2510 = vmatprep.subr.mxu0 0.0
    %2511 = vmatpush1.msra.mxu0 0.0
    %2512 = vmatprep.subr.mxu0 0.0
    %2513 = vmatpush1.msra.mxu0 0.0
    %2514 = vmatprep.subr.mxu0 0.0
    %2515 = vmatpush1.msra.mxu0 0.0
    %2516 = vmatprep.subr.mxu0 0.0
    %2517 = vmatpush1.msra.mxu0 0.0
    %2518 = vmatprep.subr.mxu0 0.0
    %2519 = vmatpush1.msra.mxu0 0.0
    %2520 = vmatprep.subr.mxu0 0.0
    %2521 = vmatpush1.msra.mxu0 0.0
    %2522 = vmatprep.subr.mxu0 0.0
    %2523 = vmatpush1.msra.mxu0 0.0
    %2524 = vmatprep.subr.mxu0 0.0
    %2525 = vmatpush1.msra.mxu0 0.0
    %2526 = vmatprep.subr.mxu0 0.0
    %2527 = vmatpush1.msra.mxu0 0.0
    %2528 = vmatprep.subr.mxu0 0.0
    %2529 = vmatpush1.msra.mxu0 0.0
    %2530 = vmatprep.subr.mxu0 0.0
    %2531 = vmatpush1.msra.mxu0 0.0
    %2532 = vmatprep.mubr.f32.mxu0 0.0
    %2533 = vmatmul.mubr.f32.gmra.mrb[0].mxu0 %v2466
    %v2534 = vpop.f32.mrb[0].mxu0
    %v2535 = vadd.f32 %v2464, %v2534
    %v2536 = vpop.f32.mrb[0].mxu0
    %2537 = vdwg.mxu0
    %2538 = vst [vmem:[#allocation5] sm:$0xff] %v2535
    // Predicated region
    $region10: #{tpu_custom_call.1} parent=1 // pred_check
      _
    $region11: #{tpu_custom_call.1} parent=1 // pred_check_branch
      %2540 = sbr.rel (0) target = $region13
    $region12: #{tpu_custom_call.1} parent=1 // pred_region
      %s2542 = ssub.s32 128, 128
      %2543 = vsyncadd [#allocation4], %s2542
      %s2545 = sshll.u32 [#allocation5], 4
      %s2546 = int_to_ptr.vmem [resolvable:$true] %s2545
      %2548 = dma.vmem_to_hbm [thread:$0]  %s2546, 128, %s1, [#allocation4]
    $region13: #{tpu_custom_call.1} parent=1 // pred_fallthru
      _
    // Predicated region
    $region14: #{tpu_custom_call.1} parent=1 // pred_check
      _
    $region15: #{tpu_custom_call.1} parent=1 // pred_check_branch
      %2550 = sbr.rel (0) target = $region17
    $region16: #{tpu_custom_call.1} parent=1 // pred_region
      %2551 = dma.done [#allocation4], 128
    $region17: #{tpu_custom_call.1} parent=1 // pred_fallthru
      _
    %2552 = vsyncpa [#allocation3], 1
    %2553 = vsyncpa [#allocation4], 1

</llo_original>
